<compile_context>
chip_gen: v6e
topology: v6e:2x2x1
jax: 0.10.0
libtpu: 0.0.40
codegen_flags: <defaults>
</compile_context>

<pallas_src>
import functools
import math

import numpy as np
import jax
import jax.numpy as jnp
from jax.experimental import pallas as pl
from jax.experimental.pallas import tpu as pltpu

# ----------------------------- configuration ------------------------------
OBS_SHAPE = (4, 16, 16)      # (C, H, W) frame-stacked pixels
ACTION_DIM = 4
HIDDEN_DIM = 32
ENC_FEATURE_DIM = 32
NUM_FILTERS = 8
LOG_STD_MIN = -10.0
LOG_STD_MAX = 2.0
LN_EPS = 1e-5
OUT_LANES = 128              # lane-dense output slab width
assert 3 * ACTION_DIM + 1 <= OUT_LANES


# --------------------------- fused Pallas kernel ---------------------------
def _actor_fused_kernel(x_ref, noise_ref,
                        w1_ref, b1_ref, w2_ref, b2_ref,
                        wfc_ref, bfc_ref, g_ref, lnb_ref,
                        wh1_ref, bh1_ref, wh2_ref, bh2_ref,
                        wnn_ref, bnn_ref,
                        out_ref, *, action_dim, log_std_min, log_std_max):
    f32 = jnp.float32

    def mm(a_f32, w_ref_):
        # bf16 operands on the MXU, f32 accumulation.
        return jnp.dot(a_f32.astype(jnp.bfloat16), w_ref_[...],
                       preferred_element_type=f32)

    # ---- encoder: pixel normalization + conv stack (Toeplitz matmuls) ----
    x = x_ref[...] * (1.0 / 255.0)                         # (TM, C*H*W) f32
    y = jnp.maximum(mm(x, w1_ref) + b1_ref[...], 0.0)      # conv1 + ReLU
    y = jnp.maximum(mm(y, w2_ref) + b2_ref[...], 0.0)      # conv2 + ReLU

    # ---- encoder: fc -> LayerNorm -> tanh (all f32 on the VPU/EUP) ----
    h = mm(y, wfc_ref) + bfc_ref[...]
    mean = jnp.mean(h, axis=-1, keepdims=True)
    var = jnp.mean(jnp.square(h - mean), axis=-1, keepdims=True)
    h = (h - mean) * jax.lax.rsqrt(var + LN_EPS)
    feat = jnp.tanh(h * g_ref[...] + lnb_ref[...])

    # ---- actor head: Linear-ReLU-Linear-ReLU -> actor_nn ----
    l = jnp.maximum(mm(feat, wh1_ref) + bh1_ref[...], 0.0)
    l = jnp.maximum(mm(l, wh2_ref) + bh2_ref[...], 0.0)
    o = mm(l, wnn_ref) + bnn_ref[...]                      # (TM, 2*A)

    # ---- tail: chunk, log_std squash, pi, gaussian log-prob, tanh squash ----
    mu = o[:, :action_dim]
    log_std = jnp.tanh(o[:, action_dim:])
    log_std = log_std_min + 0.5 * (log_std_max - log_std_min) * (log_std + 1.0)
    noise = noise_ref[...]
    pi = mu + noise * jnp.exp(log_std)

    residual = jnp.sum(-0.5 * jnp.square(noise) - log_std,
                       axis=-1, keepdims=True)
    log_pi = residual - 0.5 * math.log(2.0 * math.pi) * action_dim

    mu_t = jnp.tanh(mu)
    pi_t = jnp.tanh(pi)
    log_pi = log_pi - jnp.sum(
        jnp.log(jnp.maximum(1.0 - jnp.square(pi_t), 0.0) + 1e-6),
        axis=-1, keepdims=True)

    # ---- single lane-dense output slab: [mu | pi | log_std | log_pi | 0] ----
    out_ref[...] = jnp.zeros_like(out_ref)
    out_ref[:, 0:action_dim] = mu_t
    out_ref[:, action_dim:2 * action_dim] = pi_t
    out_ref[:, 2 * action_dim:3 * action_dim] = log_std
    out_ref[:, 3 * action_dim:3 * action_dim + 1] = log_pi


# ------------------- conv -> dense (Toeplitz) matmul lowering ---------------
def conv_as_dense(w, b, in_h, in_w, stride):
    """Lower a VALID-padded Conv2d to a dense matmul.

    Returns (W_big, b_big) such that
        Conv2d(x).reshape(N, -1) == x.reshape(N, -1) @ W_big + b_big
    with both flattens in PyTorch NCHW (channel-major) order.
    """
    cout, cin, kh, kw = w.shape
    oh = (in_h - kh) // stride + 1
    ow = (in_w - kw) // stride + 1
    sh = (np.arange(in_h)[:, None, None]
          == np.arange(oh)[None, :, None] * stride
          + np.arange(kh)[None, None, :]).astype(np.float32)      # (H, OH, KH)
    sw = (np.arange(in_w)[:, None, None]
          == np.arange(ow)[None, :, None] * stride
          + np.arange(kw)[None, None, :]).astype(np.float32)      # (W, OW, KW)
    dense = jnp.einsum("hpi,wqj,dkij->khwdpq", sh, sw, w)
    dense = dense.reshape(cin * in_h * in_w, cout * oh * ow)
    b_big = jnp.repeat(b, oh * ow)[None, :]                       # (1, Cout*OH*OW)
    return dense, b_big


# ---------------------------- parameter handling ----------------------------
def orthogonal(key, shape, gain=1.0):
    return jax.nn.initializers.orthogonal(scale=gain)(key, shape, jnp.float32)


def init_raw_params(key):
    """Parameters in the PyTorch layouts, with sac_ae weight_init."""
    ks = jax.random.split(key, 6)
    relu_gain = math.sqrt(2.0)
    c, h, _ = OBS_SHAPE
    oh1 = (h - 3) // 2 + 1
    oh2 = oh1 - 3 + 1
    flat = NUM_FILTERS * oh2 * oh2

    conv1_w = jnp.zeros((NUM_FILTERS, c, 3, 3), jnp.float32).at[:, :, 1, 1].set(
        orthogonal(ks[0], (NUM_FILTERS, c), relu_gain))
    conv2_w = jnp.zeros((NUM_FILTERS, NUM_FILTERS, 3, 3), jnp.float32).at[:, :, 1, 1].set(
        orthogonal(ks[1], (NUM_FILTERS, NUM_FILTERS), relu_gain))
    return {
        "conv1_w": conv1_w, "conv1_b": jnp.zeros((NUM_FILTERS,), jnp.float32),
        "conv2_w": conv2_w, "conv2_b": jnp.zeros((NUM_FILTERS,), jnp.float32),
        "fc_w": orthogonal(ks[2], (ENC_FEATURE_DIM, flat)),
        "fc_b": jnp.zeros((ENC_FEATURE_DIM,), jnp.float32),
        "ln_g": jnp.ones((ENC_FEATURE_DIM,), jnp.float32),
        "ln_b": jnp.zeros((ENC_FEATURE_DIM,), jnp.float32),
        "head1_w": orthogonal(ks[3], (HIDDEN_DIM, ENC_FEATURE_DIM)),
        "head1_b": jnp.zeros((HIDDEN_DIM,), jnp.float32),
        "head2_w": orthogonal(ks[4], (HIDDEN_DIM, HIDDEN_DIM)),
        "head2_b": jnp.zeros((HIDDEN_DIM,), jnp.float32),
        "nn_w": orthogonal(ks[5], (2 * ACTION_DIM, HIDDEN_DIM)),
        "nn_b": jnp.zeros((2 * ACTION_DIM,), jnp.float32),
    }


def prepare_kernel_params(raw):
    """Kernel-ready parameters: dense conv matrices + right-multiply weights,
    matmul operands pre-cast to bf16 (halves weight DMA), biases/LN in f32."""
    c, h, w = OBS_SHAPE
    oh1 = (h - 3) // 2 + 1
    ow1 = (w - 3) // 2 + 1
    w1d, b1d = conv_as_dense(raw["conv1_w"], raw["conv1_b"], h, w, stride=2)
    w2d, b2d = conv_as_dense(raw["conv2_w"], raw["conv2_b"], oh1, ow1, stride=1)
    bf16, f32 = jnp.bfloat16, jnp.float32
    return {
        "w1": w1d.astype(bf16), "b1": b1d.astype(f32),
        "w2": w2d.astype(bf16), "b2": b2d.astype(f32),
        "wfc": raw["fc_w"].T.astype(bf16), "bfc": raw["fc_b"][None, :].astype(f32),
        "ln_g": raw["ln_g"][None, :].astype(f32),
        "ln_b": raw["ln_b"][None, :].astype(f32),
        "wh1": raw["head1_w"].T.astype(bf16), "bh1": raw["head1_b"][None, :].astype(f32),
        "wh2": raw["head2_w"].T.astype(bf16), "bh2": raw["head2_b"][None, :].astype(f32),
        "wnn": raw["nn_w"].T.astype(bf16), "bnn": raw["nn_b"][None, :].astype(f32),
    }


# ------------------------------ forward pass --------------------------------
_WEIGHT_ORDER = ("w1", "b1", "w2", "b2", "wfc", "bfc", "ln_g", "ln_b",
                 "wh1", "bh1", "wh2", "bh2", "wnn", "bnn")


@jax.jit
def _actor_forward_impl(params, obs, noise):
    b = obs.shape[0]
    x = obs.reshape(b, -1).astype(jnp.float32)      # NCHW flatten (free)
    noise = noise.astype(jnp.float32)

    # batch tile: sublane-aligned, capped at 256 rows per grid step
    if b <= 256:
        tm = max(8, ((b + 7) // 8) * 8)
    else:
        tm = 256
    n_blocks = pl.cdiv(b, tm)
    b_pad = n_blocks * tm
    if b_pad != b:
        x = jnp.pad(x, ((0, b_pad - b), (0, 0)))
        noise = jnp.pad(noise, ((0, b_pad - b), (0, 0)))

    weights = [params[k] for k in _WEIGHT_ORDER]

    def full_spec(a):       # whole array resident in VMEM, fetched once
        return pl.BlockSpec(a.shape, lambda i: (0, 0))

    slab = pl.pallas_call(
        functools.partial(_actor_fused_kernel, action_dim=ACTION_DIM,
                          log_std_min=LOG_STD_MIN, log_std_max=LOG_STD_MAX),
        out_shape=jax.ShapeDtypeStruct((b_pad, OUT_LANES), jnp.float32),
        grid=(n_blocks,),
        in_specs=[pl.BlockSpec((tm, x.shape[1]), lambda i: (i, 0)),
                  pl.BlockSpec((tm, ACTION_DIM), lambda i: (i, 0))]
                 + [full_spec(wt) for wt in weights],
        out_specs=pl.BlockSpec((tm, OUT_LANES), lambda i: (i, 0)),
        compiler_params=pltpu.CompilerParams(
            dimension_semantics=("parallel",)),   # shard batch over v7x's 2 TCs
    )(x, noise, *weights)

    a = ACTION_DIM
    mu = slab[:b, 0:a]
    pi = slab[:b, a:2 * a]
    log_std = slab[:b, 2 * a:3 * a]
    log_pi = slab[:b, 3 * a:3 * a + 1]
    return mu, pi, log_pi, log_std


def actor_forward(params, obs, noise, compute_pi=True, compute_log_pi=True):
    """Mirrors Actor.forward.  `noise` plays the role of torch.randn_like(mu)."""
    mu, pi, log_pi, log_std = _actor_forward_impl(params, obs, noise)
    # TODO(synk): compute_pi/compute_log_pi=False just drop outputs here; the
    # fused kernel always computes them (negligible cost at these shapes).
    if not compute_pi:
        pi, log_pi = None, None
    if not compute_log_pi:
        log_pi = None
    return mu, pi, log_pi, log_std


# ----------------------- pure-JAX reference (validation) --------------------
def actor_forward_reference(raw, obs, noise):
    """Straight port of the PyTorch module (XLA only, no Pallas).  Weights are
    rounded to bf16 to match the values stored for the kernel."""
    bf = lambda a: a.astype(jnp.bfloat16).astype(jnp.float32)
    dn = ("NCHW", "OIHW", "NCHW")
    x = obs.astype(jnp.float32) / 255.0
    x = jax.lax.conv_general_dilated(x, bf(raw["conv1_w"]), (2, 2), "VALID",
                                     dimension_numbers=dn)
    x = jax.nn.relu(x + raw["conv1_b"][None, :, None, None])
    x = jax.lax.conv_general_dilated(x, bf(raw["conv2_w"]), (1, 1), "VALID",
                                     dimension_numbers=dn)
    x = jax.nn.relu(x + raw["conv2_b"][None, :, None, None])
    h = x.reshape(x.shape[0], -1)
    h = h @ bf(raw["fc_w"]).T + raw["fc_b"]
    mean = h.mean(-1, keepdims=True)
    var = ((h - mean) ** 2).mean(-1, keepdims=True)
    h = (h - mean) * jax.lax.rsqrt(var + LN_EPS)
    feat = jnp.tanh(h * raw["ln_g"] + raw["ln_b"])
    l = jax.nn.relu(feat @ bf(raw["head1_w"]).T + raw["head1_b"])
    l = jax.nn.relu(l @ bf(raw["head2_w"]).T + raw["head2_b"])
    o = l @ bf(raw["nn_w"]).T + raw["nn_b"]
    mu, log_std = o[:, :ACTION_DIM], o[:, ACTION_DIM:]
    log_std = jnp.tanh(log_std)
    log_std = LOG_STD_MIN + 0.5 * (LOG_STD_MAX - LOG_STD_MIN) * (log_std + 1.0)
    pi = mu + noise * jnp.exp(log_std)
    residual = jnp.sum(-0.5 * noise ** 2 - log_std, -1, keepdims=True)
    log_pi = residual - 0.5 * math.log(2.0 * math.pi) * ACTION_DIM
    mu = jnp.tanh(mu)
    pi = jnp.tanh(pi)
    log_pi = log_pi - jnp.sum(jnp.log(jax.nn.relu(1.0 - pi ** 2) + 1e-6),
                              -1, keepdims=True)
    return mu, pi, log_pi, log_std


# ---------------------------------- main ------------------------------------
if __name__ == "__main__":
    key = jax.random.PRNGKey(0)
    pkey, okey, nkey = jax.random.split(key, 3)

    raw = init_raw_params(pkey)
    params = prepare_kernel_params(raw)

    batch = 2
    obs = jax.random.uniform(okey, (batch,) + OBS_SHAPE, jnp.float32, 0.0, 255.0)
    noise = jax.random.normal(nkey, (batch, ACTION_DIM), jnp.float32)

    mu, pi, log_pi, log_std = actor_forward(params, obs, noise)
    jax.block_until_ready((mu, pi, log_pi, log_std))

    assert mu.shape == (batch, ACTION_DIM)
    assert pi.shape == (batch, ACTION_DIM)
    assert log_pi.shape == (batch, 1)
    assert log_std.shape == (batch, ACTION_DIM)

    # correctness vs. the pure-JAX port of the PyTorch module
    rmu, rpi, rlogpi, rls = actor_forward_reference(raw, obs, noise)
    for got, want in ((mu, rmu), (pi, rpi), (log_pi, rlogpi), (log_std, rls)):
        assert bool(jnp.all(jnp.isfinite(got)))
        assert bool(jnp.allclose(got, want, rtol=5e-2, atol=5e-2)), (got, want)

    print("KERNEL_OK")
</pallas_src>

<mosaic_0001>
module attributes {stable_mosaic.version = 11 : i64} {
  func.func @_actor_fused_kernel(%arg0: i32, %arg1: memref<8x1024xf32, #tpu.memory_space<vmem>>, %arg2: memref<8x4xf32, #tpu.memory_space<vmem>>, %arg3: memref<1024x392xbf16, #tpu.memory_space<vmem>>, %arg4: memref<1x392xf32, #tpu.memory_space<vmem>>, %arg5: memref<392x200xbf16, #tpu.memory_space<vmem>>, %arg6: memref<1x200xf32, #tpu.memory_space<vmem>>, %arg7: memref<200x32xbf16, #tpu.memory_space<vmem>>, %arg8: memref<1x32xf32, #tpu.memory_space<vmem>>, %arg9: memref<1x32xf32, #tpu.memory_space<vmem>>, %arg10: memref<1x32xf32, #tpu.memory_space<vmem>>, %arg11: memref<32x32xbf16, #tpu.memory_space<vmem>>, %arg12: memref<1x32xf32, #tpu.memory_space<vmem>>, %arg13: memref<32x32xbf16, #tpu.memory_space<vmem>>, %arg14: memref<1x32xf32, #tpu.memory_space<vmem>>, %arg15: memref<32x8xbf16, #tpu.memory_space<vmem>>, %arg16: memref<1x8xf32, #tpu.memory_space<vmem>>, %arg17: memref<8x128xf32, #tpu.memory_space<vmem>>) attributes {dimension_semantics = [#tpu.dimension_semantics<parallel>], iteration_bounds = array<i64: 1>, scalar_prefetch = 0 : i64, scratch_operands = 0 : i64, tpu.core_type = #tpu.core_type<tc>, window_params = [{transform_indices = @transform_0, window_bounds = array<i64: 8, 1024>}, {transform_indices = @transform_1, window_bounds = array<i64: 8, 4>}, {pipeline_mode = #tpu.pipeline_mode<synchronous>, transform_indices = @transform_2, window_bounds = array<i64: 1024, 392>}, {pipeline_mode = #tpu.pipeline_mode<synchronous>, transform_indices = @transform_3, window_bounds = array<i64: 1, 392>}, {pipeline_mode = #tpu.pipeline_mode<synchronous>, transform_indices = @transform_4, window_bounds = array<i64: 392, 200>}, {pipeline_mode = #tpu.pipeline_mode<synchronous>, transform_indices = @transform_5, window_bounds = array<i64: 1, 200>}, {pipeline_mode = #tpu.pipeline_mode<synchronous>, transform_indices = @transform_6, window_bounds = array<i64: 200, 32>}, {pipeline_mode = #tpu.pipeline_mode<synchronous>, transform_indices = @transform_7, window_bounds = array<i64: 1, 32>}, {pipeline_mode = #tpu.pipeline_mode<synchronous>, transform_indices = @transform_8, window_bounds = array<i64: 1, 32>}, {pipeline_mode = #tpu.pipeline_mode<synchronous>, transform_indices = @transform_9, window_bounds = array<i64: 1, 32>}, {pipeline_mode = #tpu.pipeline_mode<synchronous>, transform_indices = @transform_10, window_bounds = array<i64: 32, 32>}, {pipeline_mode = #tpu.pipeline_mode<synchronous>, transform_indices = @transform_11, window_bounds = array<i64: 1, 32>}, {pipeline_mode = #tpu.pipeline_mode<synchronous>, transform_indices = @transform_12, window_bounds = array<i64: 32, 32>}, {pipeline_mode = #tpu.pipeline_mode<synchronous>, transform_indices = @transform_13, window_bounds = array<i64: 1, 32>}, {pipeline_mode = #tpu.pipeline_mode<synchronous>, transform_indices = @transform_14, window_bounds = array<i64: 32, 8>}, {pipeline_mode = #tpu.pipeline_mode<synchronous>, transform_indices = @transform_15, window_bounds = array<i64: 1, 8>}, {transform_indices = @transform_16, window_bounds = array<i64: 8, 128>}]} {
    %c0 = arith.constant 0 : index
    %c0_0 = arith.constant 0 : index
    %0 = vector.load %arg1[%c0, %c0_0] : memref<8x1024xf32, #tpu.memory_space<vmem>>, vector<8x1024xf32>
    %cst = arith.constant 0.00392156886 : f32
    %1 = vector.broadcast %cst : f32 to vector<8x1024xf32>
    %2 = arith.mulf %0, %1 : vector<8x1024xf32>
    %3 = arith.truncf %2 : vector<8x1024xf32> to vector<8x1024xbf16>
    %c0_1 = arith.constant 0 : index
    %c0_2 = arith.constant 0 : index
    %4 = vector.load %arg3[%c0_1, %c0_2] : memref<1024x392xbf16, #tpu.memory_space<vmem>>, vector<1024x392xbf16>
    %cst_3 = arith.constant dense<0.000000e+00> : vector<8x392xf32>
    %5 = tpu.matmul %3, %4, %cst_3 {dimension_numbers = #tpu.dot_dimension_numbers<[1], [0], [0], [1], [0, 0, 1, 1], [], []>} : vector<8x1024xbf16>, vector<1024x392xbf16>, vector<8x392xf32> -> vector<8x392xf32>
    %c0_4 = arith.constant 0 : index
    %c0_5 = arith.constant 0 : index
    %6 = vector.load %arg4[%c0_4, %c0_5] : memref<1x392xf32, #tpu.memory_space<vmem>>, vector<1x392xf32>
    %7 = vector.broadcast %6 : vector<1x392xf32> to vector<8x392xf32>
    %8 = arith.addf %5, %7 : vector<8x392xf32>
    %cst_6 = arith.constant 0.000000e+00 : f32
    %9 = vector.broadcast %cst_6 : f32 to vector<8x392xf32>
    %10 = arith.maximumf %8, %9 : vector<8x392xf32>
    %11 = arith.truncf %10 : vector<8x392xf32> to vector<8x392xbf16>
    %c0_7 = arith.constant 0 : index
    %c0_8 = arith.constant 0 : index
    %12 = vector.load %arg5[%c0_7, %c0_8] : memref<392x200xbf16, #tpu.memory_space<vmem>>, vector<392x200xbf16>
    %cst_9 = arith.constant dense<0.000000e+00> : vector<8x200xf32>
    %13 = tpu.matmul %11, %12, %cst_9 {dimension_numbers = #tpu.dot_dimension_numbers<[1], [0], [0], [1], [0, 0, 1, 1], [], []>} : vector<8x392xbf16>, vector<392x200xbf16>, vector<8x200xf32> -> vector<8x200xf32>
    %c0_10 = arith.constant 0 : index
    %c0_11 = arith.constant 0 : index
    %14 = vector.load %arg6[%c0_10, %c0_11] : memref<1x200xf32, #tpu.memory_space<vmem>>, vector<1x200xf32>
    %15 = vector.broadcast %14 : vector<1x200xf32> to vector<8x200xf32>
    %16 = arith.addf %13, %15 : vector<8x200xf32>
    %cst_12 = arith.constant 0.000000e+00 : f32
    %17 = vector.broadcast %cst_12 : f32 to vector<8x200xf32>
    %18 = arith.maximumf %16, %17 : vector<8x200xf32>
    %19 = arith.truncf %18 : vector<8x200xf32> to vector<8x200xbf16>
    %c0_13 = arith.constant 0 : index
    %c0_14 = arith.constant 0 : index
    %20 = vector.load %arg7[%c0_13, %c0_14] : memref<200x32xbf16, #tpu.memory_space<vmem>>, vector<200x32xbf16>
    %cst_15 = arith.constant dense<0.000000e+00> : vector<8x32xf32>
    %21 = tpu.matmul %19, %20, %cst_15 {dimension_numbers = #tpu.dot_dimension_numbers<[1], [0], [0], [1], [0, 0, 1, 1], [], []>} : vector<8x200xbf16>, vector<200x32xbf16>, vector<8x32xf32> -> vector<8x32xf32>
    %c0_16 = arith.constant 0 : index
    %c0_17 = arith.constant 0 : index
    %22 = vector.load %arg8[%c0_16, %c0_17] : memref<1x32xf32, #tpu.memory_space<vmem>>, vector<1x32xf32>
    %23 = vector.broadcast %22 : vector<1x32xf32> to vector<8x32xf32>
    %24 = arith.addf %21, %23 : vector<8x32xf32>
    %cst_18 = arith.constant dense<0.000000e+00> : vector<8xf32>
    %25 = vector.multi_reduction <add>, %24, %cst_18 [1] : vector<8x32xf32> to vector<8xf32>
    %26 = vector.shape_cast %25 : vector<8xf32> to vector<8x1xf32>
    %cst_19 = arith.constant 3.200000e+01 : f32
    %27 = vector.broadcast %cst_19 : f32 to vector<8x1xf32>
    %28 = arith.divf %26, %27 : vector<8x1xf32>
    %29 = vector.broadcast %28 : vector<8x1xf32> to vector<8x32xf32>
    %30 = arith.subf %24, %29 : vector<8x32xf32>
    %31 = arith.mulf %30, %30 : vector<8x32xf32>
    %cst_20 = arith.constant dense<0.000000e+00> : vector<8xf32>
    %32 = vector.multi_reduction <add>, %31, %cst_20 [1] : vector<8x32xf32> to vector<8xf32>
    %33 = vector.shape_cast %32 : vector<8xf32> to vector<8x1xf32>
    %cst_21 = arith.constant 3.200000e+01 : f32
    %34 = vector.broadcast %cst_21 : f32 to vector<8x1xf32>
    %35 = arith.divf %33, %34 : vector<8x1xf32>
    %36 = vector.broadcast %28 : vector<8x1xf32> to vector<8x32xf32>
    %37 = arith.subf %24, %36 : vector<8x32xf32>
    %cst_22 = arith.constant 9.99999974E-6 : f32
    %38 = vector.broadcast %cst_22 : f32 to vector<8x1xf32>
    %39 = arith.addf %35, %38 : vector<8x1xf32>
    %40 = math.rsqrt %39 : vector<8x1xf32>
    %41 = vector.broadcast %40 : vector<8x1xf32> to vector<8x32xf32>
    %42 = arith.mulf %37, %41 : vector<8x32xf32>
    %c0_23 = arith.constant 0 : index
    %c0_24 = arith.constant 0 : index
    %43 = vector.load %arg9[%c0_23, %c0_24] : memref<1x32xf32, #tpu.memory_space<vmem>>, vector<1x32xf32>
    %44 = vector.broadcast %43 : vector<1x32xf32> to vector<8x32xf32>
    %45 = arith.mulf %42, %44 : vector<8x32xf32>
    %c0_25 = arith.constant 0 : index
    %c0_26 = arith.constant 0 : index
    %46 = vector.load %arg10[%c0_25, %c0_26] : memref<1x32xf32, #tpu.memory_space<vmem>>, vector<1x32xf32>
    %47 = vector.broadcast %46 : vector<1x32xf32> to vector<8x32xf32>
    %48 = arith.addf %45, %47 : vector<8x32xf32>
    %49 = math.tanh %48 : vector<8x32xf32>
    %50 = arith.truncf %49 : vector<8x32xf32> to vector<8x32xbf16>
    %c0_27 = arith.constant 0 : index
    %c0_28 = arith.constant 0 : index
    %51 = vector.load %arg11[%c0_27, %c0_28] : memref<32x32xbf16, #tpu.memory_space<vmem>>, vector<32x32xbf16>
    %cst_29 = arith.constant dense<0.000000e+00> : vector<8x32xf32>
    %52 = tpu.matmul %50, %51, %cst_29 {dimension_numbers = #tpu.dot_dimension_numbers<[1], [0], [0], [1], [0, 0, 1, 1], [], []>} : vector<8x32xbf16>, vector<32x32xbf16>, vector<8x32xf32> -> vector<8x32xf32>
    %c0_30 = arith.constant 0 : index
    %c0_31 = arith.constant 0 : index
    %53 = vector.load %arg12[%c0_30, %c0_31] : memref<1x32xf32, #tpu.memory_space<vmem>>, vector<1x32xf32>
    %54 = vector.broadcast %53 : vector<1x32xf32> to vector<8x32xf32>
    %55 = arith.addf %52, %54 : vector<8x32xf32>
    %cst_32 = arith.constant 0.000000e+00 : f32
    %56 = vector.broadcast %cst_32 : f32 to vector<8x32xf32>
    %57 = arith.maximumf %55, %56 : vector<8x32xf32>
    %58 = arith.truncf %57 : vector<8x32xf32> to vector<8x32xbf16>
    %c0_33 = arith.constant 0 : index
    %c0_34 = arith.constant 0 : index
    %59 = vector.load %arg13[%c0_33, %c0_34] : memref<32x32xbf16, #tpu.memory_space<vmem>>, vector<32x32xbf16>
    %cst_35 = arith.constant dense<0.000000e+00> : vector<8x32xf32>
    %60 = tpu.matmul %58, %59, %cst_35 {dimension_numbers = #tpu.dot_dimension_numbers<[1], [0], [0], [1], [0, 0, 1, 1], [], []>} : vector<8x32xbf16>, vector<32x32xbf16>, vector<8x32xf32> -> vector<8x32xf32>
    %c0_36 = arith.constant 0 : index
    %c0_37 = arith.constant 0 : index
    %61 = vector.load %arg14[%c0_36, %c0_37] : memref<1x32xf32, #tpu.memory_space<vmem>>, vector<1x32xf32>
    %62 = vector.broadcast %61 : vector<1x32xf32> to vector<8x32xf32>
    %63 = arith.addf %60, %62 : vector<8x32xf32>
    %cst_38 = arith.constant 0.000000e+00 : f32
    %64 = vector.broadcast %cst_38 : f32 to vector<8x32xf32>
    %65 = arith.maximumf %63, %64 : vector<8x32xf32>
    %66 = arith.truncf %65 : vector<8x32xf32> to vector<8x32xbf16>
    %c0_39 = arith.constant 0 : index
    %c0_40 = arith.constant 0 : index
    %67 = vector.load %arg15[%c0_39, %c0_40] : memref<32x8xbf16, #tpu.memory_space<vmem>>, vector<32x8xbf16>
    %cst_41 = arith.constant dense<0.000000e+00> : vector<8x8xf32>
    %68 = tpu.matmul %66, %67, %cst_41 {dimension_numbers = #tpu.dot_dimension_numbers<[1], [0], [0], [1], [0, 0, 1, 1], [], []>} : vector<8x32xbf16>, vector<32x8xbf16>, vector<8x8xf32> -> vector<8x8xf32>
    %c0_42 = arith.constant 0 : index
    %c0_43 = arith.constant 0 : index
    %69 = vector.load %arg16[%c0_42, %c0_43] : memref<1x8xf32, #tpu.memory_space<vmem>>, vector<1x8xf32>
    %70 = vector.broadcast %69 : vector<1x8xf32> to vector<8x8xf32>
    %71 = arith.addf %68, %70 : vector<8x8xf32>
    %72 = vector.extract_strided_slice %71 {offsets = [0, 0], sizes = [8, 4], strides = [1, 1]} : vector<8x8xf32> to vector<8x4xf32>
    %73 = vector.extract_strided_slice %71 {offsets = [0, 4], sizes = [8, 4], strides = [1, 1]} : vector<8x8xf32> to vector<8x4xf32>
    %74 = math.tanh %73 : vector<8x4xf32>
    %cst_44 = arith.constant 1.000000e+00 : f32
    %75 = vector.broadcast %cst_44 : f32 to vector<8x4xf32>
    %76 = arith.addf %74, %75 : vector<8x4xf32>
    %cst_45 = arith.constant 6.000000e+00 : f32
    %77 = vector.broadcast %cst_45 : f32 to vector<8x4xf32>
    %78 = arith.mulf %77, %76 : vector<8x4xf32>
    %cst_46 = arith.constant -1.000000e+01 : f32
    %79 = vector.broadcast %cst_46 : f32 to vector<8x4xf32>
    %80 = arith.addf %79, %78 : vector<8x4xf32>
    %c0_47 = arith.constant 0 : index
    %c0_48 = arith.constant 0 : index
    %81 = vector.load %arg2[%c0_47, %c0_48] : memref<8x4xf32, #tpu.memory_space<vmem>>, vector<8x4xf32>
    %82 = math.exp %80 : vector<8x4xf32>
    %83 = arith.mulf %81, %82 : vector<8x4xf32>
    %84 = arith.addf %72, %83 : vector<8x4xf32>
    %85 = arith.mulf %81, %81 : vector<8x4xf32>
    %cst_49 = arith.constant -5.000000e-01 : f32
    %86 = vector.broadcast %cst_49 : f32 to vector<8x4xf32>
    %87 = arith.mulf %86, %85 : vector<8x4xf32>
    %88 = arith.subf %87, %80 : vector<8x4xf32>
    %cst_50 = arith.constant dense<0.000000e+00> : vector<8xf32>
    %89 = vector.multi_reduction <add>, %88, %cst_50 [1] : vector<8x4xf32> to vector<8xf32>
    %90 = vector.shape_cast %89 : vector<8xf32> to vector<8x1xf32>
    %cst_51 = arith.constant 3.67575407 : f32
    %91 = vector.broadcast %cst_51 : f32 to vector<8x1xf32>
    %92 = arith.subf %90, %91 : vector<8x1xf32>
    %93 = math.tanh %72 : vector<8x4xf32>
    %94 = math.tanh %84 : vector<8x4xf32>
    %95 = arith.mulf %94, %94 : vector<8x4xf32>
    %cst_52 = arith.constant 1.000000e+00 : f32
    %96 = vector.broadcast %cst_52 : f32 to vector<8x4xf32>
    %97 = arith.subf %96, %95 : vector<8x4xf32>
    %cst_53 = arith.constant 0.000000e+00 : f32
    %98 = vector.broadcast %cst_53 : f32 to vector<8x4xf32>
    %99 = arith.maximumf %97, %98 : vector<8x4xf32>
    %cst_54 = arith.constant 9.99999997E-7 : f32
    %100 = vector.broadcast %cst_54 : f32 to vector<8x4xf32>
    %101 = arith.addf %99, %100 : vector<8x4xf32>
    %102 = math.log %101 : vector<8x4xf32>
    %cst_55 = arith.constant dense<0.000000e+00> : vector<8xf32>
    %103 = vector.multi_reduction <add>, %102, %cst_55 [1] : vector<8x4xf32> to vector<8xf32>
    %104 = vector.shape_cast %103 : vector<8xf32> to vector<8x1xf32>
    %105 = arith.subf %92, %104 : vector<8x1xf32>
    %cst_56 = arith.constant 0.000000e+00 : f32
    %106 = vector.broadcast %cst_56 : f32 to vector<8x128xf32>
    %c0_57 = arith.constant 0 : index
    %c0_58 = arith.constant 0 : index
    %107 = vector.load %arg17[%c0_57, %c0_58] : memref<8x128xf32, #tpu.memory_space<vmem>>, vector<8x128xf32>
    tpu.vector_store %arg17[%c0_57, %c0_58], %106 {strides = array<i32>} : memref<8x128xf32, #tpu.memory_space<vmem>>, vector<8x128xf32>,
    %c0_59 = arith.constant 0 : index
    %c0_60 = arith.constant 0 : index
    %108 = vector.load %arg17[%c0_59, %c0_60] : memref<8x128xf32, #tpu.memory_space<vmem>>, vector<8x4xf32>
    tpu.vector_store %arg17[%c0_59, %c0_60], %93 {strides = array<i32>} : memref<8x128xf32, #tpu.memory_space<vmem>>, vector<8x4xf32>,
    %c0_61 = arith.constant 0 : index
    %c4 = arith.constant 4 : index
    %109 = vector.load %arg17[%c0_61, %c4] : memref<8x128xf32, #tpu.memory_space<vmem>>, vector<8x4xf32>
    tpu.vector_store %arg17[%c0_61, %c4], %94 {strides = array<i32>} : memref<8x128xf32, #tpu.memory_space<vmem>>, vector<8x4xf32>,
    %c0_62 = arith.constant 0 : index
    %c8 = arith.constant 8 : index
    %110 = vector.load %arg17[%c0_62, %c8] : memref<8x128xf32, #tpu.memory_space<vmem>>, vector<8x4xf32>
    tpu.vector_store %arg17[%c0_62, %c8], %80 {strides = array<i32>} : memref<8x128xf32, #tpu.memory_space<vmem>>, vector<8x4xf32>,
    %c0_63 = arith.constant 0 : index
    %c12 = arith.constant 12 : index
    %111 = vector.load %arg17[%c0_63, %c12] : memref<8x128xf32, #tpu.memory_space<vmem>>, vector<8x1xf32>
    tpu.vector_store %arg17[%c0_63, %c12], %105 {strides = array<i32>} : memref<8x128xf32, #tpu.memory_space<vmem>>, vector<8x1xf32>,
    return
  }
  func.func @transform_0(%arg0: i32) -> (i32, i32) {
    %c0_i32 = arith.constant 0 : i32
    %c0_i32_0 = arith.constant 0 : i32
    return %arg0, %c0_i32 : i32, i32
  }
  func.func @transform_1(%arg0: i32) -> (i32, i32) {
    %c0_i32 = arith.constant 0 : i32
    %c0_i32_0 = arith.constant 0 : i32
    return %arg0, %c0_i32 : i32, i32
  }
  func.func @transform_2(%arg0: i32) -> (i32, i32) {
    %c0_i32 = arith.constant 0 : i32
    %c0_i32_0 = arith.constant 0 : i32
    %c0_i32_1 = arith.constant 0 : i32
    return %c0_i32, %c0_i32_0 : i32, i32
  }
  func.func @transform_3(%arg0: i32) -> (i32, i32) {
    %c0_i32 = arith.constant 0 : i32
    %c0_i32_0 = arith.constant 0 : i32
    %c0_i32_1 = arith.constant 0 : i32
    return %c0_i32, %c0_i32_0 : i32, i32
  }
  func.func @transform_4(%arg0: i32) -> (i32, i32) {
    %c0_i32 = arith.constant 0 : i32
    %c0_i32_0 = arith.constant 0 : i32
    %c0_i32_1 = arith.constant 0 : i32
    return %c0_i32, %c0_i32_0 : i32, i32
  }
  func.func @transform_5(%arg0: i32) -> (i32, i32) {
    %c0_i32 = arith.constant 0 : i32
    %c0_i32_0 = arith.constant 0 : i32
    %c0_i32_1 = arith.constant 0 : i32
    return %c0_i32, %c0_i32_0 : i32, i32
  }
  func.func @transform_6(%arg0: i32) -> (i32, i32) {
    %c0_i32 = arith.constant 0 : i32
    %c0_i32_0 = arith.constant 0 : i32
    %c0_i32_1 = arith.constant 0 : i32
    return %c0_i32, %c0_i32_0 : i32, i32
  }
  func.func @transform_7(%arg0: i32) -> (i32, i32) {
    %c0_i32 = arith.constant 0 : i32
    %c0_i32_0 = arith.constant 0 : i32
    %c0_i32_1 = arith.constant 0 : i32
    return %c0_i32, %c0_i32_0 : i32, i32
  }
  func.func @transform_8(%arg0: i32) -> (i32, i32) {
    %c0_i32 = arith.constant 0 : i32
    %c0_i32_0 = arith.constant 0 : i32
    %c0_i32_1 = arith.constant 0 : i32
    return %c0_i32, %c0_i32_0 : i32, i32
  }
  func.func @transform_9(%arg0: i32) -> (i32, i32) {
    %c0_i32 = arith.constant 0 : i32
    %c0_i32_0 = arith.constant 0 : i32
    %c0_i32_1 = arith.constant 0 : i32
    return %c0_i32, %c0_i32_0 : i32, i32
  }
  func.func @transform_10(%arg0: i32) -> (i32, i32) {
    %c0_i32 = arith.constant 0 : i32
    %c0_i32_0 = arith.constant 0 : i32
    %c0_i32_1 = arith.constant 0 : i32
    return %c0_i32, %c0_i32_0 : i32, i32
  }
  func.func @transform_11(%arg0: i32) -> (i32, i32) {
    %c0_i32 = arith.constant 0 : i32
    %c0_i32_0 = arith.constant 0 : i32
    %c0_i32_1 = arith.constant 0 : i32
    return %c0_i32, %c0_i32_0 : i32, i32
  }
  func.func @transform_12(%arg0: i32) -> (i32, i32) {
    %c0_i32 = arith.constant 0 : i32
    %c0_i32_0 = arith.constant 0 : i32
    %c0_i32_1 = arith.constant 0 : i32
    return %c0_i32, %c0_i32_0 : i32, i32
  }
  func.func @transform_13(%arg0: i32) -> (i32, i32) {
    %c0_i32 = arith.constant 0 : i32
    %c0_i32_0 = arith.constant 0 : i32
    %c0_i32_1 = arith.constant 0 : i32
    return %c0_i32, %c0_i32_0 : i32, i32
  }
  func.func @transform_14(%arg0: i32) -> (i32, i32) {
    %c0_i32 = arith.constant 0 : i32
    %c0_i32_0 = arith.constant 0 : i32
    %c0_i32_1 = arith.constant 0 : i32
    return %c0_i32, %c0_i32_0 : i32, i32
  }
  func.func @transform_15(%arg0: i32) -> (i32, i32) {
    %c0_i32 = arith.constant 0 : i32
    %c0_i32_0 = arith.constant 0 : i32
    %c0_i32_1 = arith.constant 0 : i32
    return %c0_i32, %c0_i32_0 : i32, i32
  }
  func.func @transform_16(%arg0: i32) -> (i32, i32) {
    %c0_i32 = arith.constant 0 : i32
    %c0_i32_0 = arith.constant 0 : i32
    return %arg0, %c0_i32 : i32, i32
  }
}

</mosaic_0001>

<llo_original>
// kernel: _actor_forward_impl.1
$region0: #{_actor_forward_impl.1}
  #allocation0 [shape = 'u32[]', space=smem, size = 0x4, offset = 0x4, fixed_abs, tag = 'smem constant byte address 0x4 - core index']
  #allocation1 [shape = 'u32[144,128]{1,0:T(1,128)}', space=vmem, size = 0x12000, scoped, tag = 'internal scratch']
  %s0 = inlined_call_operand.vmem [shape: f32[8,1024], index: 0, kind: input, shape index: {}]
  %s1 = inlined_call_operand.vmem [shape: f32[8,4], index: 1, kind: input, shape index: {}]
  %s2 = inlined_call_operand.vmem [shape: bf16[1024,392], index: 2, kind: input, shape index: {}]
  %s3 = inlined_call_operand.vmem [shape: f32[1,392], index: 3, kind: input, shape index: {}]
  %s4 = inlined_call_operand.vmem [shape: bf16[392,200], index: 4, kind: input, shape index: {}]
  %s5 = inlined_call_operand.vmem [shape: f32[1,200], index: 5, kind: input, shape index: {}]
  %s6 = inlined_call_operand.vmem [shape: bf16[200,32], index: 6, kind: input, shape index: {}]
  %s7 = inlined_call_operand.vmem [shape: f32[1,32], index: 7, kind: input, shape index: {}]
  %s8 = inlined_call_operand.vmem [shape: f32[1,32], index: 8, kind: input, shape index: {}]
  %s9 = inlined_call_operand.vmem [shape: f32[1,32], index: 9, kind: input, shape index: {}]
  %s10 = inlined_call_operand.vmem [shape: bf16[32,32], index: 10, kind: input, shape index: {}]
  %s11 = inlined_call_operand.vmem [shape: f32[1,32], index: 11, kind: input, shape index: {}]
  %s12 = inlined_call_operand.vmem [shape: bf16[32,32], index: 12, kind: input, shape index: {}]
  %s13 = inlined_call_operand.vmem [shape: f32[1,32], index: 13, kind: input, shape index: {}]
  %s14 = inlined_call_operand.vmem [shape: bf16[32,8], index: 14, kind: input, shape index: {}]
  %s15 = inlined_call_operand.vmem [shape: f32[1,8], index: 15, kind: input, shape index: {}]
  %s16 = inlined_call_operand.vmem [shape: f32[8,128], index: 16, kind: output, shape index: {}]
  %s17 = sld [smem:[#allocation0]]
  $region74: #{_actor_forward_impl.1} parent=0
    _
  %s19 = ssub.s32 1, %s17
  %s20 = scalar_select 0, %s19, %s17
  // Predicated region
  $region2: #{_actor_forward_impl.1} parent=0 // pred_check
    _
  $region3: #{_actor_forward_impl.1} parent=0 // pred_check_branch
    %22 = sbr.rel (0) target = $region5
  $region4: #{_actor_forward_impl.1} parent=0 // pred_region
    _
  $region5: #{_actor_forward_impl.1} parent=0 // pred_fallthru
    _
  // Predicated region
  $region6: #{_actor_forward_impl.1} parent=0 // pred_check
    _
  $region7: #{_actor_forward_impl.1} parent=0 // pred_check_branch
    %24 = sbr.rel (0) target = $region9
  $region8: #{_actor_forward_impl.1} parent=0 // pred_region
    _
  $region9: #{_actor_forward_impl.1} parent=0 // pred_fallthru
    _
  // Predicated region
  $region10: #{_actor_forward_impl.1} parent=0 // pred_check
    _
  $region11: #{_actor_forward_impl.1} parent=0 // pred_check_branch
    %26 = sbr.rel (0) target = $region13
  $region12: #{_actor_forward_impl.1} parent=0 // pred_region
    _
  $region13: #{_actor_forward_impl.1} parent=0 // pred_fallthru
    _
  // Predicated region
  $region14: #{_actor_forward_impl.1} parent=0 // pred_check
    _
  $region15: #{_actor_forward_impl.1} parent=0 // pred_check_branch
    %28 = sbr.rel (0) target = $region17
  $region16: #{_actor_forward_impl.1} parent=0 // pred_region
    _
  $region17: #{_actor_forward_impl.1} parent=0 // pred_fallthru
    _
  // Predicated region
  $region18: #{_actor_forward_impl.1} parent=0 // pred_check
    _
  $region19: #{_actor_forward_impl.1} parent=0 // pred_check_branch
    %30 = sbr.rel (0) target = $region21
  $region20: #{_actor_forward_impl.1} parent=0 // pred_region
    _
  $region21: #{_actor_forward_impl.1} parent=0 // pred_fallthru
    _
  // Predicated region
  $region22: #{_actor_forward_impl.1} parent=0 // pred_check
    _
  $region23: #{_actor_forward_impl.1} parent=0 // pred_check_branch
    %32 = sbr.rel (0) target = $region25
  $region24: #{_actor_forward_impl.1} parent=0 // pred_region
    _
  $region25: #{_actor_forward_impl.1} parent=0 // pred_fallthru
    _
  // Predicated region
  $region26: #{_actor_forward_impl.1} parent=0 // pred_check
    _
  $region27: #{_actor_forward_impl.1} parent=0 // pred_check_branch
    %34 = sbr.rel (0) target = $region29
  $region28: #{_actor_forward_impl.1} parent=0 // pred_region
    _
  $region29: #{_actor_forward_impl.1} parent=0 // pred_fallthru
    _
  // Predicated region
  $region30: #{_actor_forward_impl.1} parent=0 // pred_check
    _
  $region31: #{_actor_forward_impl.1} parent=0 // pred_check_branch
    %36 = sbr.rel (0) target = $region33
  $region32: #{_actor_forward_impl.1} parent=0 // pred_region
    _
  $region33: #{_actor_forward_impl.1} parent=0 // pred_fallthru
    _
  // Predicated region
  $region34: #{_actor_forward_impl.1} parent=0 // pred_check
    _
  $region35: #{_actor_forward_impl.1} parent=0 // pred_check_branch
    %38 = sbr.rel (0) target = $region37
  $region36: #{_actor_forward_impl.1} parent=0 // pred_region
    _
  $region37: #{_actor_forward_impl.1} parent=0 // pred_fallthru
    _
  // Predicated region
  $region38: #{_actor_forward_impl.1} parent=0 // pred_check
    _
  $region39: #{_actor_forward_impl.1} parent=0 // pred_check_branch
    %40 = sbr.rel (0) target = $region41
  $region40: #{_actor_forward_impl.1} parent=0 // pred_region
    _
  $region41: #{_actor_forward_impl.1} parent=0 // pred_fallthru
    _
  // Predicated region
  $region42: #{_actor_forward_impl.1} parent=0 // pred_check
    _
  $region43: #{_actor_forward_impl.1} parent=0 // pred_check_branch
    %42 = sbr.rel (0) target = $region45
  $region44: #{_actor_forward_impl.1} parent=0 // pred_region
    _
  $region45: #{_actor_forward_impl.1} parent=0 // pred_fallthru
    _
  // Predicated region
  $region46: #{_actor_forward_impl.1} parent=0 // pred_check
    _
  $region47: #{_actor_forward_impl.1} parent=0 // pred_check_branch
    %44 = sbr.rel (0) target = $region49
  $region48: #{_actor_forward_impl.1} parent=0 // pred_region
    _
  $region49: #{_actor_forward_impl.1} parent=0 // pred_fallthru
    _
  // Predicated region
  $region50: #{_actor_forward_impl.1} parent=0 // pred_check
    _
  $region51: #{_actor_forward_impl.1} parent=0 // pred_check_branch
    %46 = sbr.rel (0) target = $region53
  $region52: #{_actor_forward_impl.1} parent=0 // pred_region
    _
  $region53: #{_actor_forward_impl.1} parent=0 // pred_fallthru
    _
  // Predicated region
  $region54: #{_actor_forward_impl.1} parent=0 // pred_check
    _
  $region55: #{_actor_forward_impl.1} parent=0 // pred_check_branch
    %48 = sbr.rel (0) target = $region57
  $region56: #{_actor_forward_impl.1} parent=0 // pred_region
    _
  $region57: #{_actor_forward_impl.1} parent=0 // pred_fallthru
    _
  // Predicated region
  $region58: #{_actor_forward_impl.1} parent=0 // pred_check
    _
  $region59: #{_actor_forward_impl.1} parent=0 // pred_check_branch
    %50 = sbr.rel (0) target = $region61
  $region60: #{_actor_forward_impl.1} parent=0 // pred_region
    _
  $region61: #{_actor_forward_impl.1} parent=0 // pred_fallthru
    _
  // Predicated region
  $region62: #{_actor_forward_impl.1} parent=0 // pred_check
    _
  $region63: #{_actor_forward_impl.1} parent=0 // pred_check_branch
    %52 = sbr.rel (0) target = $region65
  $region64: #{_actor_forward_impl.1} parent=0 // pred_region
    _
  $region65: #{_actor_forward_impl.1} parent=0 // pred_fallthru
    _
  %v54 = vld [vmem:[%s0] sm:$0xff]
  %v55 = vld [vmem:[%s0 + $0x8] sm:$0xff]
  %v56 = vld [vmem:[%s0 + $0x10] sm:$0xff]
  %v57 = vld [vmem:[%s0 + $0x18] sm:$0xff]
  %v58 = vld [vmem:[%s0 + $0x20] sm:$0xff]
  %v59 = vld [vmem:[%s0 + $0x28] sm:$0xff]
  %v60 = vld [vmem:[%s0 + $0x30] sm:$0xff]
  %v61 = vld [vmem:[%s0 + $0x38] sm:$0xff]
  %v62 = vmul.f32 %v54, 0.003921569
  %v63 = vmul.f32 %v55, 0.003921569
  %v64 = vmul.f32 %v56, 0.003921569
  %v65 = vmul.f32 %v57, 0.003921569
  %v66 = vmul.f32 %v58, 0.003921569
  %v67 = vmul.f32 %v59, 0.003921569
  %v68 = vmul.f32 %v60, 0.003921569
  %v69 = vmul.f32 %v61, 0.003921569
  %v70 = vpack.c.bf16 %v62, %v62
  %v71 = vpack.c.bf16 %v63, %v63
  %v72 = vpack.c.bf16 %v64, %v64
  %v73 = vpack.c.bf16 %v65, %v65
  %v74 = vpack.c.bf16 %v66, %v66
  %v75 = vpack.c.bf16 %v67, %v67
  %v76 = vpack.c.bf16 %v68, %v68
  %v77 = vpack.c.bf16 %v69, %v69
  %v78 = vld [vmem:[%s2] sm:$0xff]
  %v79 = vld [vmem:[%s2 + $0x8] sm:$0xff]
  %v80 = vld [vmem:[%s2 + $0x10] sm:$0xff]
  %v81 = vld [vmem:[%s2 + $0x18] sm:$0xff]
  %v82 = vld [vmem:[%s2 + $0x20] sm:$0xff]
  %v83 = vld [vmem:[%s2 + $0x28] sm:$0xff]
  %v84 = vld [vmem:[%s2 + $0x30] sm:$0xff]
  %v85 = vld [vmem:[%s2 + $0x38] sm:$0xff]
  %v86 = vld [vmem:[%s2 + $0x40] sm:$0xff]
  %v87 = vld [vmem:[%s2 + $0x48] sm:$0xff]
  %v88 = vld [vmem:[%s2 + $0x50] sm:$0xff]
  %v89 = vld [vmem:[%s2 + $0x58] sm:$0xff]
  %v90 = vld [vmem:[%s2 + $0x60] sm:$0xff]
  %v91 = vld [vmem:[%s2 + $0x68] sm:$0xff]
  %v92 = vld [vmem:[%s2 + $0x70] sm:$0xff]
  %v93 = vld [vmem:[%s2 + $0x78] sm:$0xff]
  %v94 = vld [vmem:[%s2 + $0x80] sm:$0xff]
  %v95 = vld [vmem:[%s2 + $0x88] sm:$0xff]
  %v96 = vld [vmem:[%s2 + $0x90] sm:$0xff]
  %v97 = vld [vmem:[%s2 + $0x98] sm:$0xff]
  %v98 = vld [vmem:[%s2 + $0xa0] sm:$0xff]
  %v99 = vld [vmem:[%s2 + $0xa8] sm:$0xff]
  %v100 = vld [vmem:[%s2 + $0xb0] sm:$0xff]
  %v101 = vld [vmem:[%s2 + $0xb8] sm:$0xff]
  %v102 = vld [vmem:[%s2 + $0xc0] sm:$0xff]
  %v103 = vld [vmem:[%s2 + $0xc8] sm:$0xff]
  %v104 = vld [vmem:[%s2 + $0xd0] sm:$0xff]
  %v105 = vld [vmem:[%s2 + $0xd8] sm:$0xff]
  %v106 = vld [vmem:[%s2 + $0xe0] sm:$0xff]
  %v107 = vld [vmem:[%s2 + $0xe8] sm:$0xff]
  %v108 = vld [vmem:[%s2 + $0xf0] sm:$0xff]
  %v109 = vld [vmem:[%s2 + $0xf8] sm:$0xff]
  %v110 = vld [vmem:[%s2 + $0x100] sm:$0xff]
  %v111 = vld [vmem:[%s2 + $0x108] sm:$0xff]
  %v112 = vld [vmem:[%s2 + $0x110] sm:$0xff]
  %v113 = vld [vmem:[%s2 + $0x118] sm:$0xff]
  %v114 = vld [vmem:[%s2 + $0x120] sm:$0xff]
  %v115 = vld [vmem:[%s2 + $0x128] sm:$0xff]
  %v116 = vld [vmem:[%s2 + $0x130] sm:$0xff]
  %v117 = vld [vmem:[%s2 + $0x138] sm:$0xff]
  %v118 = vld [vmem:[%s2 + $0x140] sm:$0xff]
  %v119 = vld [vmem:[%s2 + $0x148] sm:$0xff]
  %v120 = vld [vmem:[%s2 + $0x150] sm:$0xff]
  %v121 = vld [vmem:[%s2 + $0x158] sm:$0xff]
  %v122 = vld [vmem:[%s2 + $0x160] sm:$0xff]
  %v123 = vld [vmem:[%s2 + $0x168] sm:$0xff]
  %v124 = vld [vmem:[%s2 + $0x170] sm:$0xff]
  %v125 = vld [vmem:[%s2 + $0x178] sm:$0xff]
  %v126 = vld [vmem:[%s2 + $0x180] sm:$0xff]
  %v127 = vld [vmem:[%s2 + $0x188] sm:$0xff]
  %v128 = vld [vmem:[%s2 + $0x190] sm:$0xff]
  %v129 = vld [vmem:[%s2 + $0x198] sm:$0xff]
  %v130 = vld [vmem:[%s2 + $0x1a0] sm:$0xff]
  %v131 = vld [vmem:[%s2 + $0x1a8] sm:$0xff]
  %v132 = vld [vmem:[%s2 + $0x1b0] sm:$0xff]
  %v133 = vld [vmem:[%s2 + $0x1b8] sm:$0xff]
  %v134 = vld [vmem:[%s2 + $0x1c0] sm:$0xff]
  %v135 = vld [vmem:[%s2 + $0x1c8] sm:$0xff]
  %v136 = vld [vmem:[%s2 + $0x1d0] sm:$0xff]
  %v137 = vld [vmem:[%s2 + $0x1d8] sm:$0xff]
  %v138 = vld [vmem:[%s2 + $0x1e0] sm:$0xff]
  %v139 = vld [vmem:[%s2 + $0x1e8] sm:$0xff]
  %v140 = vld [vmem:[%s2 + $0x1f0] sm:$0xff]
  %v141 = vld [vmem:[%s2 + $0x1f8] sm:$0xff]
  %v142 = vld [vmem:[%s2 + $0x200] sm:$0xff]
  %v143 = vld [vmem:[%s2 + $0x208] sm:$0xff]
  %v144 = vld [vmem:[%s2 + $0x210] sm:$0xff]
  %v145 = vld [vmem:[%s2 + $0x218] sm:$0xff]
  %v146 = vld [vmem:[%s2 + $0x220] sm:$0xff]
  %v147 = vld [vmem:[%s2 + $0x228] sm:$0xff]
  %v148 = vld [vmem:[%s2 + $0x230] sm:$0xff]
  %v149 = vld [vmem:[%s2 + $0x238] sm:$0xff]
  %v150 = vld [vmem:[%s2 + $0x240] sm:$0xff]
  %v151 = vld [vmem:[%s2 + $0x248] sm:$0xff]
  %v152 = vld [vmem:[%s2 + $0x250] sm:$0xff]
  %v153 = vld [vmem:[%s2 + $0x258] sm:$0xff]
  %v154 = vld [vmem:[%s2 + $0x260] sm:$0xff]
  %v155 = vld [vmem:[%s2 + $0x268] sm:$0xff]
  %v156 = vld [vmem:[%s2 + $0x270] sm:$0xff]
  %v157 = vld [vmem:[%s2 + $0x278] sm:$0xff]
  %v158 = vld [vmem:[%s2 + $0x280] sm:$0xff]
  %v159 = vld [vmem:[%s2 + $0x288] sm:$0xff]
  %v160 = vld [vmem:[%s2 + $0x290] sm:$0xff]
  %v161 = vld [vmem:[%s2 + $0x298] sm:$0xff]
  %v162 = vld [vmem:[%s2 + $0x2a0] sm:$0xff]
  %v163 = vld [vmem:[%s2 + $0x2a8] sm:$0xff]
  %v164 = vld [vmem:[%s2 + $0x2b0] sm:$0xff]
  %v165 = vld [vmem:[%s2 + $0x2b8] sm:$0xff]
  %v166 = vld [vmem:[%s2 + $0x2c0] sm:$0xff]
  %v167 = vld [vmem:[%s2 + $0x2c8] sm:$0xff]
  %v168 = vld [vmem:[%s2 + $0x2d0] sm:$0xff]
  %v169 = vld [vmem:[%s2 + $0x2d8] sm:$0xff]
  %v170 = vld [vmem:[%s2 + $0x2e0] sm:$0xff]
  %v171 = vld [vmem:[%s2 + $0x2e8] sm:$0xff]
  %v172 = vld [vmem:[%s2 + $0x2f0] sm:$0xff]
  %v173 = vld [vmem:[%s2 + $0x2f8] sm:$0xff]
  %v174 = vld [vmem:[%s2 + $0x300] sm:$0xff]
  %v175 = vld [vmem:[%s2 + $0x308] sm:$0xff]
  %v176 = vld [vmem:[%s2 + $0x310] sm:$0xff]
  %v177 = vld [vmem:[%s2 + $0x318] sm:$0xff]
  %v178 = vld [vmem:[%s2 + $0x320] sm:$0xff]
  %v179 = vld [vmem:[%s2 + $0x328] sm:$0xff]
  %v180 = vld [vmem:[%s2 + $0x330] sm:$0xff]
  %v181 = vld [vmem:[%s2 + $0x338] sm:$0xff]
  %v182 = vld [vmem:[%s2 + $0x340] sm:$0xff]
  %v183 = vld [vmem:[%s2 + $0x348] sm:$0xff]
  %v184 = vld [vmem:[%s2 + $0x350] sm:$0xff]
  %v185 = vld [vmem:[%s2 + $0x358] sm:$0xff]
  %v186 = vld [vmem:[%s2 + $0x360] sm:$0xff]
  %v187 = vld [vmem:[%s2 + $0x368] sm:$0xff]
  %v188 = vld [vmem:[%s2 + $0x370] sm:$0xff]
  %v189 = vld [vmem:[%s2 + $0x378] sm:$0xff]
  %v190 = vld [vmem:[%s2 + $0x380] sm:$0xff]
  %v191 = vld [vmem:[%s2 + $0x388] sm:$0xff]
  %v192 = vld [vmem:[%s2 + $0x390] sm:$0xff]
  %v193 = vld [vmem:[%s2 + $0x398] sm:$0xff]
  %v194 = vld [vmem:[%s2 + $0x3a0] sm:$0xff]
  %v195 = vld [vmem:[%s2 + $0x3a8] sm:$0xff]
  %v196 = vld [vmem:[%s2 + $0x3b0] sm:$0xff]
  %v197 = vld [vmem:[%s2 + $0x3b8] sm:$0xff]
  %v198 = vld [vmem:[%s2 + $0x3c0] sm:$0xff]
  %v199 = vld [vmem:[%s2 + $0x3c8] sm:$0xff]
  %v200 = vld [vmem:[%s2 + $0x3d0] sm:$0xff]
  %v201 = vld [vmem:[%s2 + $0x3d8] sm:$0xff]
  %v202 = vld [vmem:[%s2 + $0x3e0] sm:$0xff]
  %v203 = vld [vmem:[%s2 + $0x3e8] sm:$0xff]
  %v204 = vld [vmem:[%s2 + $0x3f0] sm:$0xff]
  %v205 = vld [vmem:[%s2 + $0x3f8] sm:$0xff]
  %v206 = vld [vmem:[%s2 + $0x400] sm:$0xff]
  %v207 = vld [vmem:[%s2 + $0x408] sm:$0xff]
  %v208 = vld [vmem:[%s2 + $0x410] sm:$0xff]
  %v209 = vld [vmem:[%s2 + $0x418] sm:$0xff]
  %v210 = vld [vmem:[%s2 + $0x420] sm:$0xff]
  %v211 = vld [vmem:[%s2 + $0x428] sm:$0xff]
  %v212 = vld [vmem:[%s2 + $0x430] sm:$0xff]
  %v213 = vld [vmem:[%s2 + $0x438] sm:$0xff]
  %v214 = vld [vmem:[%s2 + $0x440] sm:$0xff]
  %v215 = vld [vmem:[%s2 + $0x448] sm:$0xff]
  %v216 = vld [vmem:[%s2 + $0x450] sm:$0xff]
  %v217 = vld [vmem:[%s2 + $0x458] sm:$0xff]
  %v218 = vld [vmem:[%s2 + $0x460] sm:$0xff]
  %v219 = vld [vmem:[%s2 + $0x468] sm:$0xff]
  %v220 = vld [vmem:[%s2 + $0x470] sm:$0xff]
  %v221 = vld [vmem:[%s2 + $0x478] sm:$0xff]
  %v222 = vld [vmem:[%s2 + $0x480] sm:$0xff]
  %v223 = vld [vmem:[%s2 + $0x488] sm:$0xff]
  %v224 = vld [vmem:[%s2 + $0x490] sm:$0xff]
  %v225 = vld [vmem:[%s2 + $0x498] sm:$0xff]
  %v226 = vld [vmem:[%s2 + $0x4a0] sm:$0xff]
  %v227 = vld [vmem:[%s2 + $0x4a8] sm:$0xff]
  %v228 = vld [vmem:[%s2 + $0x4b0] sm:$0xff]
  %v229 = vld [vmem:[%s2 + $0x4b8] sm:$0xff]
  %v230 = vld [vmem:[%s2 + $0x4c0] sm:$0xff]
  %v231 = vld [vmem:[%s2 + $0x4c8] sm:$0xff]
  %v232 = vld [vmem:[%s2 + $0x4d0] sm:$0xff]
  %v233 = vld [vmem:[%s2 + $0x4d8] sm:$0xff]
  %v234 = vld [vmem:[%s2 + $0x4e0] sm:$0xff]
  %v235 = vld [vmem:[%s2 + $0x4e8] sm:$0xff]
  %v236 = vld [vmem:[%s2 + $0x4f0] sm:$0xff]
  %v237 = vld [vmem:[%s2 + $0x4f8] sm:$0xff]
  %v238 = vld [vmem:[%s2 + $0x500] sm:$0xff]
  %v239 = vld [vmem:[%s2 + $0x508] sm:$0xff]
  %v240 = vld [vmem:[%s2 + $0x510] sm:$0xff]
  %v241 = vld [vmem:[%s2 + $0x518] sm:$0xff]
  %v242 = vld [vmem:[%s2 + $0x520] sm:$0xff]
  %v243 = vld [vmem:[%s2 + $0x528] sm:$0xff]
  %v244 = vld [vmem:[%s2 + $0x530] sm:$0xff]
  %v245 = vld [vmem:[%s2 + $0x538] sm:$0xff]
  %v246 = vld [vmem:[%s2 + $0x540] sm:$0xff]
  %v247 = vld [vmem:[%s2 + $0x548] sm:$0xff]
  %v248 = vld [vmem:[%s2 + $0x550] sm:$0xff]
  %v249 = vld [vmem:[%s2 + $0x558] sm:$0xff]
  %v250 = vld [vmem:[%s2 + $0x560] sm:$0xff]
  %v251 = vld [vmem:[%s2 + $0x568] sm:$0xff]
  %v252 = vld [vmem:[%s2 + $0x570] sm:$0xff]
  %v253 = vld [vmem:[%s2 + $0x578] sm:$0xff]
  %v254 = vld [vmem:[%s2 + $0x580] sm:$0xff]
  %v255 = vld [vmem:[%s2 + $0x588] sm:$0xff]
  %v256 = vld [vmem:[%s2 + $0x590] sm:$0xff]
  %v257 = vld [vmem:[%s2 + $0x598] sm:$0xff]
  %v258 = vld [vmem:[%s2 + $0x5a0] sm:$0xff]
  %v259 = vld [vmem:[%s2 + $0x5a8] sm:$0xff]
  %v260 = vld [vmem:[%s2 + $0x5b0] sm:$0xff]
  %v261 = vld [vmem:[%s2 + $0x5b8] sm:$0xff]
  %v262 = vld [vmem:[%s2 + $0x5c0] sm:$0xff]
  %v263 = vld [vmem:[%s2 + $0x5c8] sm:$0xff]
  %v264 = vld [vmem:[%s2 + $0x5d0] sm:$0xff]
  %v265 = vld [vmem:[%s2 + $0x5d8] sm:$0xff]
  %v266 = vld [vmem:[%s2 + $0x5e0] sm:$0xff]
  %v267 = vld [vmem:[%s2 + $0x5e8] sm:$0xff]
  %v268 = vld [vmem:[%s2 + $0x5f0] sm:$0xff]
  %v269 = vld [vmem:[%s2 + $0x5f8] sm:$0xff]
  %v270 = vld [vmem:[%s2 + $0x600] sm:$0xff]
  %v271 = vld [vmem:[%s2 + $0x608] sm:$0xff]
  %v272 = vld [vmem:[%s2 + $0x610] sm:$0xff]
  %v273 = vld [vmem:[%s2 + $0x618] sm:$0xff]
  %v274 = vld [vmem:[%s2 + $0x620] sm:$0xff]
  %v275 = vld [vmem:[%s2 + $0x628] sm:$0xff]
  %v276 = vld [vmem:[%s2 + $0x630] sm:$0xff]
  %v277 = vld [vmem:[%s2 + $0x638] sm:$0xff]
  %v278 = vld [vmem:[%s2 + $0x640] sm:$0xff]
  %v279 = vld [vmem:[%s2 + $0x648] sm:$0xff]
  %v280 = vld [vmem:[%s2 + $0x650] sm:$0xff]
  %v281 = vld [vmem:[%s2 + $0x658] sm:$0xff]
  %v282 = vld [vmem:[%s2 + $0x660] sm:$0xff]
  %v283 = vld [vmem:[%s2 + $0x668] sm:$0xff]
  %v284 = vld [vmem:[%s2 + $0x670] sm:$0xff]
  %v285 = vld [vmem:[%s2 + $0x678] sm:$0xff]
  %v286 = vld [vmem:[%s2 + $0x680] sm:$0xff]
  %v287 = vld [vmem:[%s2 + $0x688] sm:$0xff]
  %v288 = vld [vmem:[%s2 + $0x690] sm:$0xff]
  %v289 = vld [vmem:[%s2 + $0x698] sm:$0xff]
  %v290 = vld [vmem:[%s2 + $0x6a0] sm:$0xff]
  %v291 = vld [vmem:[%s2 + $0x6a8] sm:$0xff]
  %v292 = vld [vmem:[%s2 + $0x6b0] sm:$0xff]
  %v293 = vld [vmem:[%s2 + $0x6b8] sm:$0xff]
  %v294 = vld [vmem:[%s2 + $0x6c0] sm:$0xff]
  %v295 = vld [vmem:[%s2 + $0x6c8] sm:$0xff]
  %v296 = vld [vmem:[%s2 + $0x6d0] sm:$0xff]
  %v297 = vld [vmem:[%s2 + $0x6d8] sm:$0xff]
  %v298 = vld [vmem:[%s2 + $0x6e0] sm:$0xff]
  %v299 = vld [vmem:[%s2 + $0x6e8] sm:$0xff]
  %v300 = vld [vmem:[%s2 + $0x6f0] sm:$0xff]
  %v301 = vld [vmem:[%s2 + $0x6f8] sm:$0xff]
  %v302 = vld [vmem:[%s2 + $0x700] sm:$0xff]
  %v303 = vld [vmem:[%s2 + $0x708] sm:$0xff]
  %v304 = vld [vmem:[%s2 + $0x710] sm:$0xff]
  %v305 = vld [vmem:[%s2 + $0x718] sm:$0xff]
  %v306 = vld [vmem:[%s2 + $0x720] sm:$0xff]
  %v307 = vld [vmem:[%s2 + $0x728] sm:$0xff]
  %v308 = vld [vmem:[%s2 + $0x730] sm:$0xff]
  %v309 = vld [vmem:[%s2 + $0x738] sm:$0xff]
  %v310 = vld [vmem:[%s2 + $0x740] sm:$0xff]
  %v311 = vld [vmem:[%s2 + $0x748] sm:$0xff]
  %v312 = vld [vmem:[%s2 + $0x750] sm:$0xff]
  %v313 = vld [vmem:[%s2 + $0x758] sm:$0xff]
  %v314 = vld [vmem:[%s2 + $0x760] sm:$0xff]
  %v315 = vld [vmem:[%s2 + $0x768] sm:$0xff]
  %v316 = vld [vmem:[%s2 + $0x770] sm:$0xff]
  %v317 = vld [vmem:[%s2 + $0x778] sm:$0xff]
  %v318 = vld [vmem:[%s2 + $0x780] sm:$0xff]
  %v319 = vld [vmem:[%s2 + $0x788] sm:$0xff]
  %v320 = vld [vmem:[%s2 + $0x790] sm:$0xff]
  %v321 = vld [vmem:[%s2 + $0x798] sm:$0xff]
  %v322 = vld [vmem:[%s2 + $0x7a0] sm:$0xff]
  %v323 = vld [vmem:[%s2 + $0x7a8] sm:$0xff]
  %v324 = vld [vmem:[%s2 + $0x7b0] sm:$0xff]
  %v325 = vld [vmem:[%s2 + $0x7b8] sm:$0xff]
  %v326 = vld [vmem:[%s2 + $0x7c0] sm:$0xff]
  %v327 = vld [vmem:[%s2 + $0x7c8] sm:$0xff]
  %v328 = vld [vmem:[%s2 + $0x7d0] sm:$0xff]
  %v329 = vld [vmem:[%s2 + $0x7d8] sm:$0xff]
  %v330 = vld [vmem:[%s2 + $0x7e0] sm:$0xff]
  %v331 = vld [vmem:[%s2 + $0x7e8] sm:$0xff]
  %v332 = vld [vmem:[%s2 + $0x7f0] sm:$0xff]
  %v333 = vld [vmem:[%s2 + $0x7f8] sm:$0xff]
  %v334 = vld [vmem:[%s3] sm:$0xf]
  %v336 = vlaneseq
  %v337 = vshrl.u32 %v336, 7
  %v338 = vsub.s32 0, %v337
  %v339 = vrot.slane %v334, %v338
  %v340 = vlaneseq
  %v341 = vshrl.u32 %v340, 7
  %v342 = vsub.s32 1, %v341
  %v343 = vrot.slane %v334, %v342
  %v344 = vlaneseq
  %v345 = vshrl.u32 %v344, 7
  %v346 = vsub.s32 2, %v345
  %v347 = vrot.slane %v334, %v346
  %v348 = vlaneseq
  %v349 = vshrl.u32 %v348, 7
  %v350 = vsub.s32 3, %v349
  %v351 = vrot.slane %v334, %v350
  %v612 = vunpack.c.l.b16 %v78
  %v613 = vunpack.c.h.b16 %v78
  %v614 = vunpack.c.l.b16 %v79
  %v615 = vunpack.c.h.b16 %v79
  %v616 = vunpack.c.l.b16 %v80
  %v617 = vunpack.c.h.b16 %v80
  %v618 = vunpack.c.l.b16 %v81
  %v619 = vunpack.c.h.b16 %v81
  %v620 = vunpack.c.l.b16 %v82
  %v621 = vunpack.c.h.b16 %v82
  %v622 = vunpack.c.l.b16 %v83
  %v623 = vunpack.c.h.b16 %v83
  %v624 = vunpack.c.l.b16 %v84
  %v625 = vunpack.c.h.b16 %v84
  %v626 = vunpack.c.l.b16 %v85
  %v627 = vunpack.c.h.b16 %v85
  %v628 = vunpack.c.l.b16 %v86
  %v629 = vunpack.c.h.b16 %v86
  %v630 = vunpack.c.l.b16 %v87
  %v631 = vunpack.c.h.b16 %v87
  %v632 = vunpack.c.l.b16 %v88
  %v633 = vunpack.c.h.b16 %v88
  %v634 = vunpack.c.l.b16 %v89
  %v635 = vunpack.c.h.b16 %v89
  %v636 = vunpack.c.l.b16 %v90
  %v637 = vunpack.c.h.b16 %v90
  %v638 = vunpack.c.l.b16 %v91
  %v639 = vunpack.c.h.b16 %v91
  %v640 = vunpack.c.l.b16 %v92
  %v641 = vunpack.c.h.b16 %v92
  %v642 = vunpack.c.l.b16 %v93
  %v643 = vunpack.c.h.b16 %v93
  %v644 = vunpack.c.l.b16 %v94
  %v645 = vunpack.c.h.b16 %v94
  %v646 = vunpack.c.l.b16 %v95
  %v647 = vunpack.c.h.b16 %v95
  %v648 = vunpack.c.l.b16 %v96
  %v649 = vunpack.c.h.b16 %v96
  %v650 = vunpack.c.l.b16 %v97
  %v651 = vunpack.c.h.b16 %v97
  %v652 = vunpack.c.l.b16 %v98
  %v653 = vunpack.c.h.b16 %v98
  %v654 = vunpack.c.l.b16 %v99
  %v655 = vunpack.c.h.b16 %v99
  %v656 = vunpack.c.l.b16 %v100
  %v657 = vunpack.c.h.b16 %v100
  %v658 = vunpack.c.l.b16 %v101
  %v659 = vunpack.c.h.b16 %v101
  %v660 = vunpack.c.l.b16 %v102
  %v661 = vunpack.c.h.b16 %v102
  %v662 = vunpack.c.l.b16 %v103
  %v663 = vunpack.c.h.b16 %v103
  %v664 = vunpack.c.l.b16 %v104
  %v665 = vunpack.c.h.b16 %v104
  %v666 = vunpack.c.l.b16 %v105
  %v667 = vunpack.c.h.b16 %v105
  %v668 = vunpack.c.l.b16 %v106
  %v669 = vunpack.c.h.b16 %v106
  %v670 = vunpack.c.l.b16 %v107
  %v671 = vunpack.c.h.b16 %v107
  %v672 = vunpack.c.l.b16 %v108
  %v673 = vunpack.c.h.b16 %v108
  %v674 = vunpack.c.l.b16 %v109
  %v675 = vunpack.c.h.b16 %v109
  %v676 = vunpack.c.l.b16 %v110
  %v677 = vunpack.c.h.b16 %v110
  %v678 = vunpack.c.l.b16 %v111
  %v679 = vunpack.c.h.b16 %v111
  %v680 = vunpack.c.l.b16 %v112
  %v681 = vunpack.c.h.b16 %v112
  %v682 = vunpack.c.l.b16 %v113
  %v683 = vunpack.c.h.b16 %v113
  %v684 = vunpack.c.l.b16 %v114
  %v685 = vunpack.c.h.b16 %v114
  %v686 = vunpack.c.l.b16 %v115
  %v687 = vunpack.c.h.b16 %v115
  %v688 = vunpack.c.l.b16 %v116
  %v689 = vunpack.c.h.b16 %v116
  %v690 = vunpack.c.l.b16 %v117
  %v691 = vunpack.c.h.b16 %v117
  %v692 = vunpack.c.l.b16 %v118
  %v693 = vunpack.c.h.b16 %v118
  %v694 = vunpack.c.l.b16 %v119
  %v695 = vunpack.c.h.b16 %v119
  %v696 = vunpack.c.l.b16 %v120
  %v697 = vunpack.c.h.b16 %v120
  %v698 = vunpack.c.l.b16 %v121
  %v699 = vunpack.c.h.b16 %v121
  %v700 = vunpack.c.l.b16 %v122
  %v701 = vunpack.c.h.b16 %v122
  %v702 = vunpack.c.l.b16 %v123
  %v703 = vunpack.c.h.b16 %v123
  %v704 = vunpack.c.l.b16 %v124
  %v705 = vunpack.c.h.b16 %v124
  %v706 = vunpack.c.l.b16 %v125
  %v707 = vunpack.c.h.b16 %v125
  %v708 = vunpack.c.l.b16 %v126
  %v709 = vunpack.c.h.b16 %v126
  %v710 = vunpack.c.l.b16 %v127
  %v711 = vunpack.c.h.b16 %v127
  %v712 = vunpack.c.l.b16 %v128
  %v713 = vunpack.c.h.b16 %v128
  %v714 = vunpack.c.l.b16 %v129
  %v715 = vunpack.c.h.b16 %v129
  %v716 = vunpack.c.l.b16 %v130
  %v717 = vunpack.c.h.b16 %v130
  %v718 = vunpack.c.l.b16 %v131
  %v719 = vunpack.c.h.b16 %v131
  %v720 = vunpack.c.l.b16 %v132
  %v721 = vunpack.c.h.b16 %v132
  %v722 = vunpack.c.l.b16 %v133
  %v723 = vunpack.c.h.b16 %v133
  %v724 = vunpack.c.l.b16 %v134
  %v725 = vunpack.c.h.b16 %v134
  %v726 = vunpack.c.l.b16 %v135
  %v727 = vunpack.c.h.b16 %v135
  %v728 = vunpack.c.l.b16 %v136
  %v729 = vunpack.c.h.b16 %v136
  %v730 = vunpack.c.l.b16 %v137
  %v731 = vunpack.c.h.b16 %v137
  %v732 = vunpack.c.l.b16 %v138
  %v733 = vunpack.c.h.b16 %v138
  %v734 = vunpack.c.l.b16 %v139
  %v735 = vunpack.c.h.b16 %v139
  %v736 = vunpack.c.l.b16 %v140
  %v737 = vunpack.c.h.b16 %v140
  %v738 = vunpack.c.l.b16 %v141
  %v739 = vunpack.c.h.b16 %v141
  %v740 = vunpack.c.l.b16 %v142
  %v741 = vunpack.c.h.b16 %v142
  %v742 = vunpack.c.l.b16 %v143
  %v743 = vunpack.c.h.b16 %v143
  %v744 = vunpack.c.l.b16 %v144
  %v745 = vunpack.c.h.b16 %v144
  %v746 = vunpack.c.l.b16 %v145
  %v747 = vunpack.c.h.b16 %v145
  %v748 = vunpack.c.l.b16 %v146
  %v749 = vunpack.c.h.b16 %v146
  %v750 = vunpack.c.l.b16 %v147
  %v751 = vunpack.c.h.b16 %v147
  %v752 = vunpack.c.l.b16 %v148
  %v753 = vunpack.c.h.b16 %v148
  %v754 = vunpack.c.l.b16 %v149
  %v755 = vunpack.c.h.b16 %v149
  %v756 = vunpack.c.l.b16 %v150
  %v757 = vunpack.c.h.b16 %v150
  %v758 = vunpack.c.l.b16 %v151
  %v759 = vunpack.c.h.b16 %v151
  %v760 = vunpack.c.l.b16 %v152
  %v761 = vunpack.c.h.b16 %v152
  %v762 = vunpack.c.l.b16 %v153
  %v763 = vunpack.c.h.b16 %v153
  %v764 = vunpack.c.l.b16 %v154
  %v765 = vunpack.c.h.b16 %v154
  %v766 = vunpack.c.l.b16 %v155
  %v767 = vunpack.c.h.b16 %v155
  %v768 = vunpack.c.l.b16 %v156
  %v769 = vunpack.c.h.b16 %v156
  %v770 = vunpack.c.l.b16 %v157
  %v771 = vunpack.c.h.b16 %v157
  %v772 = vunpack.c.l.b16 %v158
  %v773 = vunpack.c.h.b16 %v158
  %v774 = vunpack.c.l.b16 %v159
  %v775 = vunpack.c.h.b16 %v159
  %v776 = vunpack.c.l.b16 %v160
  %v777 = vunpack.c.h.b16 %v160
  %v778 = vunpack.c.l.b16 %v161
  %v779 = vunpack.c.h.b16 %v161
  %v780 = vunpack.c.l.b16 %v162
  %v781 = vunpack.c.h.b16 %v162
  %v782 = vunpack.c.l.b16 %v163
  %v783 = vunpack.c.h.b16 %v163
  %v784 = vunpack.c.l.b16 %v164
  %v785 = vunpack.c.h.b16 %v164
  %v786 = vunpack.c.l.b16 %v165
  %v787 = vunpack.c.h.b16 %v165
  %v788 = vunpack.c.l.b16 %v166
  %v789 = vunpack.c.h.b16 %v166
  %v790 = vunpack.c.l.b16 %v167
  %v791 = vunpack.c.h.b16 %v167
  %v792 = vunpack.c.l.b16 %v168
  %v793 = vunpack.c.h.b16 %v168
  %v794 = vunpack.c.l.b16 %v169
  %v795 = vunpack.c.h.b16 %v169
  %v796 = vunpack.c.l.b16 %v170
  %v797 = vunpack.c.h.b16 %v170
  %v798 = vunpack.c.l.b16 %v171
  %v799 = vunpack.c.h.b16 %v171
  %v800 = vunpack.c.l.b16 %v172
  %v801 = vunpack.c.h.b16 %v172
  %v802 = vunpack.c.l.b16 %v173
  %v803 = vunpack.c.h.b16 %v173
  %v804 = vunpack.c.l.b16 %v174
  %v805 = vunpack.c.h.b16 %v174
  %v806 = vunpack.c.l.b16 %v175
  %v807 = vunpack.c.h.b16 %v175
  %v808 = vunpack.c.l.b16 %v176
  %v809 = vunpack.c.h.b16 %v176
  %v810 = vunpack.c.l.b16 %v177
  %v811 = vunpack.c.h.b16 %v177
  %v812 = vunpack.c.l.b16 %v178
  %v813 = vunpack.c.h.b16 %v178
  %v814 = vunpack.c.l.b16 %v179
  %v815 = vunpack.c.h.b16 %v179
  %v816 = vunpack.c.l.b16 %v180
  %v817 = vunpack.c.h.b16 %v180
  %v818 = vunpack.c.l.b16 %v181
  %v819 = vunpack.c.h.b16 %v181
  %v820 = vunpack.c.l.b16 %v182
  %v821 = vunpack.c.h.b16 %v182
  %v822 = vunpack.c.l.b16 %v183
  %v823 = vunpack.c.h.b16 %v183
  %v824 = vunpack.c.l.b16 %v184
  %v825 = vunpack.c.h.b16 %v184
  %v826 = vunpack.c.l.b16 %v185
  %v827 = vunpack.c.h.b16 %v185
  %v828 = vunpack.c.l.b16 %v186
  %v829 = vunpack.c.h.b16 %v186
  %v830 = vunpack.c.l.b16 %v187
  %v831 = vunpack.c.h.b16 %v187
  %v832 = vunpack.c.l.b16 %v188
  %v833 = vunpack.c.h.b16 %v188
  %v834 = vunpack.c.l.b16 %v189
  %v835 = vunpack.c.h.b16 %v189
  %v836 = vunpack.c.l.b16 %v190
  %v837 = vunpack.c.h.b16 %v190
  %v838 = vunpack.c.l.b16 %v191
  %v839 = vunpack.c.h.b16 %v191
  %v840 = vunpack.c.l.b16 %v192
  %v841 = vunpack.c.h.b16 %v192
  %v842 = vunpack.c.l.b16 %v193
  %v843 = vunpack.c.h.b16 %v193
  %v844 = vunpack.c.l.b16 %v194
  %v845 = vunpack.c.h.b16 %v194
  %v846 = vunpack.c.l.b16 %v195
  %v847 = vunpack.c.h.b16 %v195
  %v848 = vunpack.c.l.b16 %v196
  %v849 = vunpack.c.h.b16 %v196
  %v850 = vunpack.c.l.b16 %v197
  %v851 = vunpack.c.h.b16 %v197
  %v852 = vunpack.c.l.b16 %v198
  %v853 = vunpack.c.h.b16 %v198
  %v854 = vunpack.c.l.b16 %v199
  %v855 = vunpack.c.h.b16 %v199
  %v856 = vunpack.c.l.b16 %v200
  %v857 = vunpack.c.h.b16 %v200
  %v858 = vunpack.c.l.b16 %v201
  %v859 = vunpack.c.h.b16 %v201
  %v860 = vunpack.c.l.b16 %v202
  %v861 = vunpack.c.h.b16 %v202
  %v862 = vunpack.c.l.b16 %v203
  %v863 = vunpack.c.h.b16 %v203
  %v864 = vunpack.c.l.b16 %v204
  %v865 = vunpack.c.h.b16 %v204
  %v866 = vunpack.c.l.b16 %v205
  %v867 = vunpack.c.h.b16 %v205
  %v868 = vunpack.c.l.b16 %v206
  %v869 = vunpack.c.h.b16 %v206
  %v870 = vunpack.c.l.b16 %v207
  %v871 = vunpack.c.h.b16 %v207
  %v872 = vunpack.c.l.b16 %v208
  %v873 = vunpack.c.h.b16 %v208
  %v874 = vunpack.c.l.b16 %v209
  %v875 = vunpack.c.h.b16 %v209
  %v876 = vunpack.c.l.b16 %v210
  %v877 = vunpack.c.h.b16 %v210
  %v878 = vunpack.c.l.b16 %v211
  %v879 = vunpack.c.h.b16 %v211
  %v880 = vunpack.c.l.b16 %v212
  %v881 = vunpack.c.h.b16 %v212
  %v882 = vunpack.c.l.b16 %v213
  %v883 = vunpack.c.h.b16 %v213
  %v884 = vunpack.c.l.b16 %v214
  %v885 = vunpack.c.h.b16 %v214
  %v886 = vunpack.c.l.b16 %v215
  %v887 = vunpack.c.h.b16 %v215
  %v888 = vunpack.c.l.b16 %v216
  %v889 = vunpack.c.h.b16 %v216
  %v890 = vunpack.c.l.b16 %v217
  %v891 = vunpack.c.h.b16 %v217
  %v892 = vunpack.c.l.b16 %v218
  %v893 = vunpack.c.h.b16 %v218
  %v894 = vunpack.c.l.b16 %v219
  %v895 = vunpack.c.h.b16 %v219
  %v896 = vunpack.c.l.b16 %v220
  %v897 = vunpack.c.h.b16 %v220
  %v898 = vunpack.c.l.b16 %v221
  %v899 = vunpack.c.h.b16 %v221
  %v900 = vunpack.c.l.b16 %v222
  %v901 = vunpack.c.h.b16 %v222
  %v902 = vunpack.c.l.b16 %v223
  %v903 = vunpack.c.h.b16 %v223
  %v904 = vunpack.c.l.b16 %v224
  %v905 = vunpack.c.h.b16 %v224
  %v906 = vunpack.c.l.b16 %v225
  %v907 = vunpack.c.h.b16 %v225
  %v908 = vunpack.c.l.b16 %v226
  %v909 = vunpack.c.h.b16 %v226
  %v910 = vunpack.c.l.b16 %v227
  %v911 = vunpack.c.h.b16 %v227
  %v912 = vunpack.c.l.b16 %v228
  %v913 = vunpack.c.h.b16 %v228
  %v914 = vunpack.c.l.b16 %v229
  %v915 = vunpack.c.h.b16 %v229
  %v916 = vunpack.c.l.b16 %v230
  %v917 = vunpack.c.h.b16 %v230
  %v918 = vunpack.c.l.b16 %v231
  %v919 = vunpack.c.h.b16 %v231
  %v920 = vunpack.c.l.b16 %v232
  %v921 = vunpack.c.h.b16 %v232
  %v922 = vunpack.c.l.b16 %v233
  %v923 = vunpack.c.h.b16 %v233
  %v924 = vunpack.c.l.b16 %v234
  %v925 = vunpack.c.h.b16 %v234
  %v926 = vunpack.c.l.b16 %v235
  %v927 = vunpack.c.h.b16 %v235
  %v928 = vunpack.c.l.b16 %v236
  %v929 = vunpack.c.h.b16 %v236
  %v930 = vunpack.c.l.b16 %v237
  %v931 = vunpack.c.h.b16 %v237
  %v932 = vunpack.c.l.b16 %v238
  %v933 = vunpack.c.h.b16 %v238
  %v934 = vunpack.c.l.b16 %v239
  %v935 = vunpack.c.h.b16 %v239
  %v936 = vunpack.c.l.b16 %v240
  %v937 = vunpack.c.h.b16 %v240
  %v938 = vunpack.c.l.b16 %v241
  %v939 = vunpack.c.h.b16 %v241
  %v940 = vunpack.c.l.b16 %v242
  %v941 = vunpack.c.h.b16 %v242
  %v942 = vunpack.c.l.b16 %v243
  %v943 = vunpack.c.h.b16 %v243
  %v944 = vunpack.c.l.b16 %v244
  %v945 = vunpack.c.h.b16 %v244
  %v946 = vunpack.c.l.b16 %v245
  %v947 = vunpack.c.h.b16 %v245
  %v948 = vunpack.c.l.b16 %v246
  %v949 = vunpack.c.h.b16 %v246
  %v950 = vunpack.c.l.b16 %v247
  %v951 = vunpack.c.h.b16 %v247
  %v952 = vunpack.c.l.b16 %v248
  %v953 = vunpack.c.h.b16 %v248
  %v954 = vunpack.c.l.b16 %v249
  %v955 = vunpack.c.h.b16 %v249
  %v956 = vunpack.c.l.b16 %v250
  %v957 = vunpack.c.h.b16 %v250
  %v958 = vunpack.c.l.b16 %v251
  %v959 = vunpack.c.h.b16 %v251
  %v960 = vunpack.c.l.b16 %v252
  %v961 = vunpack.c.h.b16 %v252
  %v962 = vunpack.c.l.b16 %v253
  %v963 = vunpack.c.h.b16 %v253
  %v964 = vunpack.c.l.b16 %v254
  %v965 = vunpack.c.h.b16 %v254
  %v966 = vunpack.c.l.b16 %v255
  %v967 = vunpack.c.h.b16 %v255
  %v968 = vunpack.c.l.b16 %v256
  %v969 = vunpack.c.h.b16 %v256
  %v970 = vunpack.c.l.b16 %v257
  %v971 = vunpack.c.h.b16 %v257
  %v972 = vunpack.c.l.b16 %v258
  %v973 = vunpack.c.h.b16 %v258
  %v974 = vunpack.c.l.b16 %v259
  %v975 = vunpack.c.h.b16 %v259
  %v976 = vunpack.c.l.b16 %v260
  %v977 = vunpack.c.h.b16 %v260
  %v978 = vunpack.c.l.b16 %v261
  %v979 = vunpack.c.h.b16 %v261
  %v980 = vunpack.c.l.b16 %v262
  %v981 = vunpack.c.h.b16 %v262
  %v982 = vunpack.c.l.b16 %v263
  %v983 = vunpack.c.h.b16 %v263
  %v984 = vunpack.c.l.b16 %v264
  %v985 = vunpack.c.h.b16 %v264
  %v986 = vunpack.c.l.b16 %v265
  %v987 = vunpack.c.h.b16 %v265
  %v988 = vunpack.c.l.b16 %v266
  %v989 = vunpack.c.h.b16 %v266
  %v990 = vunpack.c.l.b16 %v267
  %v991 = vunpack.c.h.b16 %v267
  %v992 = vunpack.c.l.b16 %v268
  %v993 = vunpack.c.h.b16 %v268
  %v994 = vunpack.c.l.b16 %v269
  %v995 = vunpack.c.h.b16 %v269
  %v996 = vunpack.c.l.b16 %v270
  %v997 = vunpack.c.h.b16 %v270
  %v998 = vunpack.c.l.b16 %v271
  %v999 = vunpack.c.h.b16 %v271
  %v1000 = vunpack.c.l.b16 %v272
  %v1001 = vunpack.c.h.b16 %v272
  %v1002 = vunpack.c.l.b16 %v273
  %v1003 = vunpack.c.h.b16 %v273
  %v1004 = vunpack.c.l.b16 %v274
  %v1005 = vunpack.c.h.b16 %v274
  %v1006 = vunpack.c.l.b16 %v275
  %v1007 = vunpack.c.h.b16 %v275
  %v1008 = vunpack.c.l.b16 %v276
  %v1009 = vunpack.c.h.b16 %v276
  %v1010 = vunpack.c.l.b16 %v277
  %v1011 = vunpack.c.h.b16 %v277
  %v1012 = vunpack.c.l.b16 %v278
  %v1013 = vunpack.c.h.b16 %v278
  %v1014 = vunpack.c.l.b16 %v279
  %v1015 = vunpack.c.h.b16 %v279
  %v1016 = vunpack.c.l.b16 %v280
  %v1017 = vunpack.c.h.b16 %v280
  %v1018 = vunpack.c.l.b16 %v281
  %v1019 = vunpack.c.h.b16 %v281
  %v1020 = vunpack.c.l.b16 %v282
  %v1021 = vunpack.c.h.b16 %v282
  %v1022 = vunpack.c.l.b16 %v283
  %v1023 = vunpack.c.h.b16 %v283
  %v1024 = vunpack.c.l.b16 %v284
  %v1025 = vunpack.c.h.b16 %v284
  %v1026 = vunpack.c.l.b16 %v285
  %v1027 = vunpack.c.h.b16 %v285
  %v1028 = vunpack.c.l.b16 %v286
  %v1029 = vunpack.c.h.b16 %v286
  %v1030 = vunpack.c.l.b16 %v287
  %v1031 = vunpack.c.h.b16 %v287
  %v1032 = vunpack.c.l.b16 %v288
  %v1033 = vunpack.c.h.b16 %v288
  %v1034 = vunpack.c.l.b16 %v289
  %v1035 = vunpack.c.h.b16 %v289
  %v1036 = vunpack.c.l.b16 %v290
  %v1037 = vunpack.c.h.b16 %v290
  %v1038 = vunpack.c.l.b16 %v291
  %v1039 = vunpack.c.h.b16 %v291
  %v1040 = vunpack.c.l.b16 %v292
  %v1041 = vunpack.c.h.b16 %v292
  %v1042 = vunpack.c.l.b16 %v293
  %v1043 = vunpack.c.h.b16 %v293
  %v1044 = vunpack.c.l.b16 %v294
  %v1045 = vunpack.c.h.b16 %v294
  %v1046 = vunpack.c.l.b16 %v295
  %v1047 = vunpack.c.h.b16 %v295
  %v1048 = vunpack.c.l.b16 %v296
  %v1049 = vunpack.c.h.b16 %v296
  %v1050 = vunpack.c.l.b16 %v297
  %v1051 = vunpack.c.h.b16 %v297
  %v1052 = vunpack.c.l.b16 %v298
  %v1053 = vunpack.c.h.b16 %v298
  %v1054 = vunpack.c.l.b16 %v299
  %v1055 = vunpack.c.h.b16 %v299
  %v1056 = vunpack.c.l.b16 %v300
  %v1057 = vunpack.c.h.b16 %v300
  %v1058 = vunpack.c.l.b16 %v301
  %v1059 = vunpack.c.h.b16 %v301
  %v1060 = vunpack.c.l.b16 %v302
  %v1061 = vunpack.c.h.b16 %v302
  %v1062 = vunpack.c.l.b16 %v303
  %v1063 = vunpack.c.h.b16 %v303
  %v1064 = vunpack.c.l.b16 %v304
  %v1065 = vunpack.c.h.b16 %v304
  %v1066 = vunpack.c.l.b16 %v305
  %v1067 = vunpack.c.h.b16 %v305
  %v1068 = vunpack.c.l.b16 %v306
  %v1069 = vunpack.c.h.b16 %v306
  %v1070 = vunpack.c.l.b16 %v307
  %v1071 = vunpack.c.h.b16 %v307
  %v1072 = vunpack.c.l.b16 %v308
  %v1073 = vunpack.c.h.b16 %v308
  %v1074 = vunpack.c.l.b16 %v309
  %v1075 = vunpack.c.h.b16 %v309
  %v1076 = vunpack.c.l.b16 %v310
  %v1077 = vunpack.c.h.b16 %v310
  %v1078 = vunpack.c.l.b16 %v311
  %v1079 = vunpack.c.h.b16 %v311
  %v1080 = vunpack.c.l.b16 %v312
  %v1081 = vunpack.c.h.b16 %v312
  %v1082 = vunpack.c.l.b16 %v313
  %v1083 = vunpack.c.h.b16 %v313
  %v1084 = vunpack.c.l.b16 %v314
  %v1085 = vunpack.c.h.b16 %v314
  %v1086 = vunpack.c.l.b16 %v315
  %v1087 = vunpack.c.h.b16 %v315
  %v1088 = vunpack.c.l.b16 %v316
  %v1089 = vunpack.c.h.b16 %v316
  %v1090 = vunpack.c.l.b16 %v317
  %v1091 = vunpack.c.h.b16 %v317
  %v1092 = vunpack.c.l.b16 %v318
  %v1093 = vunpack.c.h.b16 %v318
  %v1094 = vunpack.c.l.b16 %v319
  %v1095 = vunpack.c.h.b16 %v319
  %v1096 = vunpack.c.l.b16 %v320
  %v1097 = vunpack.c.h.b16 %v320
  %v1098 = vunpack.c.l.b16 %v321
  %v1099 = vunpack.c.h.b16 %v321
  %v1100 = vunpack.c.l.b16 %v322
  %v1101 = vunpack.c.h.b16 %v322
  %v1102 = vunpack.c.l.b16 %v323
  %v1103 = vunpack.c.h.b16 %v323
  %v1104 = vunpack.c.l.b16 %v324
  %v1105 = vunpack.c.h.b16 %v324
  %v1106 = vunpack.c.l.b16 %v325
  %v1107 = vunpack.c.h.b16 %v325
  %v1108 = vunpack.c.l.b16 %v326
  %v1109 = vunpack.c.h.b16 %v326
  %v1110 = vunpack.c.l.b16 %v327
  %v1111 = vunpack.c.h.b16 %v327
  %v1112 = vunpack.c.l.b16 %v328
  %v1113 = vunpack.c.h.b16 %v328
  %v1114 = vunpack.c.l.b16 %v329
  %v1115 = vunpack.c.h.b16 %v329
  %v1116 = vunpack.c.l.b16 %v330
  %v1117 = vunpack.c.h.b16 %v330
  %v1118 = vunpack.c.l.b16 %v331
  %v1119 = vunpack.c.h.b16 %v331
  %v1120 = vunpack.c.l.b16 %v332
  %v1121 = vunpack.c.h.b16 %v332
  %v1122 = vunpack.c.l.b16 %v333
  %v1123 = vunpack.c.h.b16 %v333
  %v1124 = vpack.c.b16 %v616, %v612
  %v1125 = vpack.c.b16 %v617, %v613
  %v1126 = vpack.c.b16 %v618, %v614
  %v1127 = vpack.c.b16 %v619, %v615
  %v1128 = vpack.c.b16 %v624, %v620
  %v1129 = vpack.c.b16 %v625, %v621
  %v1130 = vpack.c.b16 %v626, %v622
  %v1131 = vpack.c.b16 %v627, %v623
  %v1132 = vpack.c.b16 %v632, %v628
  %v1133 = vpack.c.b16 %v633, %v629
  %v1134 = vpack.c.b16 %v634, %v630
  %v1135 = vpack.c.b16 %v635, %v631
  %v1136 = vpack.c.b16 %v640, %v636
  %v1137 = vpack.c.b16 %v641, %v637
  %v1138 = vpack.c.b16 %v642, %v638
  %v1139 = vpack.c.b16 %v643, %v639
  %v1140 = vpack.c.b16 %v648, %v644
  %v1141 = vpack.c.b16 %v649, %v645
  %v1142 = vpack.c.b16 %v650, %v646
  %v1143 = vpack.c.b16 %v651, %v647
  %v1144 = vpack.c.b16 %v656, %v652
  %v1145 = vpack.c.b16 %v657, %v653
  %v1146 = vpack.c.b16 %v658, %v654
  %v1147 = vpack.c.b16 %v659, %v655
  %v1148 = vpack.c.b16 %v664, %v660
  %v1149 = vpack.c.b16 %v665, %v661
  %v1150 = vpack.c.b16 %v666, %v662
  %v1151 = vpack.c.b16 %v667, %v663
  %v1152 = vpack.c.b16 %v672, %v668
  %v1153 = vpack.c.b16 %v673, %v669
  %v1154 = vpack.c.b16 %v674, %v670
  %v1155 = vpack.c.b16 %v675, %v671
  %v1156 = vpack.c.b16 %v680, %v676
  %v1157 = vpack.c.b16 %v681, %v677
  %v1158 = vpack.c.b16 %v682, %v678
  %v1159 = vpack.c.b16 %v683, %v679
  %v1160 = vpack.c.b16 %v688, %v684
  %v1161 = vpack.c.b16 %v689, %v685
  %v1162 = vpack.c.b16 %v690, %v686
  %v1163 = vpack.c.b16 %v691, %v687
  %v1164 = vpack.c.b16 %v696, %v692
  %v1165 = vpack.c.b16 %v697, %v693
  %v1166 = vpack.c.b16 %v698, %v694
  %v1167 = vpack.c.b16 %v699, %v695
  %v1168 = vpack.c.b16 %v704, %v700
  %v1169 = vpack.c.b16 %v705, %v701
  %v1170 = vpack.c.b16 %v706, %v702
  %v1171 = vpack.c.b16 %v707, %v703
  %v1172 = vpack.c.b16 %v712, %v708
  %v1173 = vpack.c.b16 %v713, %v709
  %v1174 = vpack.c.b16 %v714, %v710
  %v1175 = vpack.c.b16 %v715, %v711
  %v1176 = vpack.c.b16 %v720, %v716
  %v1177 = vpack.c.b16 %v721, %v717
  %v1178 = vpack.c.b16 %v722, %v718
  %v1179 = vpack.c.b16 %v723, %v719
  %v1180 = vpack.c.b16 %v728, %v724
  %v1181 = vpack.c.b16 %v729, %v725
  %v1182 = vpack.c.b16 %v730, %v726
  %v1183 = vpack.c.b16 %v731, %v727
  %v1184 = vpack.c.b16 %v736, %v732
  %v1185 = vpack.c.b16 %v737, %v733
  %v1186 = vpack.c.b16 %v738, %v734
  %v1187 = vpack.c.b16 %v739, %v735
  %v1188 = vpack.c.b16 %v744, %v740
  %v1189 = vpack.c.b16 %v745, %v741
  %v1190 = vpack.c.b16 %v746, %v742
  %v1191 = vpack.c.b16 %v747, %v743
  %v1192 = vpack.c.b16 %v752, %v748
  %v1193 = vpack.c.b16 %v753, %v749
  %v1194 = vpack.c.b16 %v754, %v750
  %v1195 = vpack.c.b16 %v755, %v751
  %v1196 = vpack.c.b16 %v760, %v756
  %v1197 = vpack.c.b16 %v761, %v757
  %v1198 = vpack.c.b16 %v762, %v758
  %v1199 = vpack.c.b16 %v763, %v759
  %v1200 = vpack.c.b16 %v768, %v764
  %v1201 = vpack.c.b16 %v769, %v765
  %v1202 = vpack.c.b16 %v770, %v766
  %v1203 = vpack.c.b16 %v771, %v767
  %v1204 = vpack.c.b16 %v776, %v772
  %v1205 = vpack.c.b16 %v777, %v773
  %v1206 = vpack.c.b16 %v778, %v774
  %v1207 = vpack.c.b16 %v779, %v775
  %v1208 = vpack.c.b16 %v784, %v780
  %v1209 = vpack.c.b16 %v785, %v781
  %v1210 = vpack.c.b16 %v786, %v782
  %v1211 = vpack.c.b16 %v787, %v783
  %v1212 = vpack.c.b16 %v792, %v788
  %v1213 = vpack.c.b16 %v793, %v789
  %v1214 = vpack.c.b16 %v794, %v790
  %v1215 = vpack.c.b16 %v795, %v791
  %v1216 = vpack.c.b16 %v800, %v796
  %v1217 = vpack.c.b16 %v801, %v797
  %v1218 = vpack.c.b16 %v802, %v798
  %v1219 = vpack.c.b16 %v803, %v799
  %v1220 = vpack.c.b16 %v808, %v804
  %v1221 = vpack.c.b16 %v809, %v805
  %v1222 = vpack.c.b16 %v810, %v806
  %v1223 = vpack.c.b16 %v811, %v807
  %v1224 = vpack.c.b16 %v816, %v812
  %v1225 = vpack.c.b16 %v817, %v813
  %v1226 = vpack.c.b16 %v818, %v814
  %v1227 = vpack.c.b16 %v819, %v815
  %v1228 = vpack.c.b16 %v824, %v820
  %v1229 = vpack.c.b16 %v825, %v821
  %v1230 = vpack.c.b16 %v826, %v822
  %v1231 = vpack.c.b16 %v827, %v823
  %v1232 = vpack.c.b16 %v832, %v828
  %v1233 = vpack.c.b16 %v833, %v829
  %v1234 = vpack.c.b16 %v834, %v830
  %v1235 = vpack.c.b16 %v835, %v831
  %v1236 = vpack.c.b16 %v840, %v836
  %v1237 = vpack.c.b16 %v841, %v837
  %v1238 = vpack.c.b16 %v842, %v838
  %v1239 = vpack.c.b16 %v843, %v839
  %v1240 = vpack.c.b16 %v848, %v844
  %v1241 = vpack.c.b16 %v849, %v845
  %v1242 = vpack.c.b16 %v850, %v846
  %v1243 = vpack.c.b16 %v851, %v847
  %v1244 = vpack.c.b16 %v856, %v852
  %v1245 = vpack.c.b16 %v857, %v853
  %v1246 = vpack.c.b16 %v858, %v854
  %v1247 = vpack.c.b16 %v859, %v855
  %v1248 = vpack.c.b16 %v864, %v860
  %v1249 = vpack.c.b16 %v865, %v861
  %v1250 = vpack.c.b16 %v866, %v862
  %v1251 = vpack.c.b16 %v867, %v863
  %v1252 = vpack.c.b16 %v872, %v868
  %v1253 = vpack.c.b16 %v873, %v869
  %v1254 = vpack.c.b16 %v874, %v870
  %v1255 = vpack.c.b16 %v875, %v871
  %v1256 = vpack.c.b16 %v880, %v876
  %v1257 = vpack.c.b16 %v881, %v877
  %v1258 = vpack.c.b16 %v882, %v878
  %v1259 = vpack.c.b16 %v883, %v879
  %v1260 = vpack.c.b16 %v888, %v884
  %v1261 = vpack.c.b16 %v889, %v885
  %v1262 = vpack.c.b16 %v890, %v886
  %v1263 = vpack.c.b16 %v891, %v887
  %v1264 = vpack.c.b16 %v896, %v892
  %v1265 = vpack.c.b16 %v897, %v893
  %v1266 = vpack.c.b16 %v898, %v894
  %v1267 = vpack.c.b16 %v899, %v895
  %v1268 = vpack.c.b16 %v904, %v900
  %v1269 = vpack.c.b16 %v905, %v901
  %v1270 = vpack.c.b16 %v906, %v902
  %v1271 = vpack.c.b16 %v907, %v903
  %v1272 = vpack.c.b16 %v912, %v908
  %v1273 = vpack.c.b16 %v913, %v909
  %v1274 = vpack.c.b16 %v914, %v910
  %v1275 = vpack.c.b16 %v915, %v911
  %v1276 = vpack.c.b16 %v920, %v916
  %v1277 = vpack.c.b16 %v921, %v917
  %v1278 = vpack.c.b16 %v922, %v918
  %v1279 = vpack.c.b16 %v923, %v919
  %v1280 = vpack.c.b16 %v928, %v924
  %v1281 = vpack.c.b16 %v929, %v925
  %v1282 = vpack.c.b16 %v930, %v926
  %v1283 = vpack.c.b16 %v931, %v927
  %v1284 = vpack.c.b16 %v936, %v932
  %v1285 = vpack.c.b16 %v937, %v933
  %v1286 = vpack.c.b16 %v938, %v934
  %v1287 = vpack.c.b16 %v939, %v935
  %v1288 = vpack.c.b16 %v944, %v940
  %v1289 = vpack.c.b16 %v945, %v941
  %v1290 = vpack.c.b16 %v946, %v942
  %v1291 = vpack.c.b16 %v947, %v943
  %v1292 = vpack.c.b16 %v952, %v948
  %v1293 = vpack.c.b16 %v953, %v949
  %v1294 = vpack.c.b16 %v954, %v950
  %v1295 = vpack.c.b16 %v955, %v951
  %v1296 = vpack.c.b16 %v960, %v956
  %v1297 = vpack.c.b16 %v961, %v957
  %v1298 = vpack.c.b16 %v962, %v958
  %v1299 = vpack.c.b16 %v963, %v959
  %v1300 = vpack.c.b16 %v968, %v964
  %v1301 = vpack.c.b16 %v969, %v965
  %v1302 = vpack.c.b16 %v970, %v966
  %v1303 = vpack.c.b16 %v971, %v967
  %v1304 = vpack.c.b16 %v976, %v972
  %v1305 = vpack.c.b16 %v977, %v973
  %v1306 = vpack.c.b16 %v978, %v974
  %v1307 = vpack.c.b16 %v979, %v975
  %v1308 = vpack.c.b16 %v984, %v980
  %v1309 = vpack.c.b16 %v985, %v981
  %v1310 = vpack.c.b16 %v986, %v982
  %v1311 = vpack.c.b16 %v987, %v983
  %v1312 = vpack.c.b16 %v992, %v988
  %v1313 = vpack.c.b16 %v993, %v989
  %v1314 = vpack.c.b16 %v994, %v990
  %v1315 = vpack.c.b16 %v995, %v991
  %v1316 = vpack.c.b16 %v1000, %v996
  %v1317 = vpack.c.b16 %v1001, %v997
  %v1318 = vpack.c.b16 %v1002, %v998
  %v1319 = vpack.c.b16 %v1003, %v999
  %v1320 = vpack.c.b16 %v1008, %v1004
  %v1321 = vpack.c.b16 %v1009, %v1005
  %v1322 = vpack.c.b16 %v1010, %v1006
  %v1323 = vpack.c.b16 %v1011, %v1007
  %v1324 = vpack.c.b16 %v1016, %v1012
  %v1325 = vpack.c.b16 %v1017, %v1013
  %v1326 = vpack.c.b16 %v1018, %v1014
  %v1327 = vpack.c.b16 %v1019, %v1015
  %v1328 = vpack.c.b16 %v1024, %v1020
  %v1329 = vpack.c.b16 %v1025, %v1021
  %v1330 = vpack.c.b16 %v1026, %v1022
  %v1331 = vpack.c.b16 %v1027, %v1023
  %v1332 = vpack.c.b16 %v1032, %v1028
  %v1333 = vpack.c.b16 %v1033, %v1029
  %v1334 = vpack.c.b16 %v1034, %v1030
  %v1335 = vpack.c.b16 %v1035, %v1031
  %v1336 = vpack.c.b16 %v1040, %v1036
  %v1337 = vpack.c.b16 %v1041, %v1037
  %v1338 = vpack.c.b16 %v1042, %v1038
  %v1339 = vpack.c.b16 %v1043, %v1039
  %v1340 = vpack.c.b16 %v1048, %v1044
  %v1341 = vpack.c.b16 %v1049, %v1045
  %v1342 = vpack.c.b16 %v1050, %v1046
  %v1343 = vpack.c.b16 %v1051, %v1047
  %v1344 = vpack.c.b16 %v1056, %v1052
  %v1345 = vpack.c.b16 %v1057, %v1053
  %v1346 = vpack.c.b16 %v1058, %v1054
  %v1347 = vpack.c.b16 %v1059, %v1055
  %v1348 = vpack.c.b16 %v1064, %v1060
  %v1349 = vpack.c.b16 %v1065, %v1061
  %v1350 = vpack.c.b16 %v1066, %v1062
  %v1351 = vpack.c.b16 %v1067, %v1063
  %v1352 = vpack.c.b16 %v1072, %v1068
  %v1353 = vpack.c.b16 %v1073, %v1069
  %v1354 = vpack.c.b16 %v1074, %v1070
  %v1355 = vpack.c.b16 %v1075, %v1071
  %v1356 = vpack.c.b16 %v1080, %v1076
  %v1357 = vpack.c.b16 %v1081, %v1077
  %v1358 = vpack.c.b16 %v1082, %v1078
  %v1359 = vpack.c.b16 %v1083, %v1079
  %v1360 = vpack.c.b16 %v1088, %v1084
  %v1361 = vpack.c.b16 %v1089, %v1085
  %v1362 = vpack.c.b16 %v1090, %v1086
  %v1363 = vpack.c.b16 %v1091, %v1087
  %v1364 = vpack.c.b16 %v1096, %v1092
  %v1365 = vpack.c.b16 %v1097, %v1093
  %v1366 = vpack.c.b16 %v1098, %v1094
  %v1367 = vpack.c.b16 %v1099, %v1095
  %v1368 = vpack.c.b16 %v1104, %v1100
  %v1369 = vpack.c.b16 %v1105, %v1101
  %v1370 = vpack.c.b16 %v1106, %v1102
  %v1371 = vpack.c.b16 %v1107, %v1103
  %v1372 = vpack.c.b16 %v1112, %v1108
  %v1373 = vpack.c.b16 %v1113, %v1109
  %v1374 = vpack.c.b16 %v1114, %v1110
  %v1375 = vpack.c.b16 %v1115, %v1111
  %v1376 = vpack.c.b16 %v1120, %v1116
  %v1377 = vpack.c.b16 %v1121, %v1117
  %v1378 = vpack.c.b16 %v1122, %v1118
  %v1379 = vpack.c.b16 %v1123, %v1119
  %1636 = vmatprep.subr.bf16.mxu0 %v1153
  %1637 = vmatpush1.bf16.msra.mxu0 %v1152
  %1638 = vmatprep.subr.bf16.mxu0 %v1149
  %1639 = vmatpush1.bf16.msra.mxu0 %v1148
  %1640 = vmatprep.subr.bf16.mxu0 %v1145
  %1641 = vmatpush1.bf16.msra.mxu0 %v1144
  %1642 = vmatprep.subr.bf16.mxu0 %v1141
  %1643 = vmatpush1.bf16.msra.mxu0 %v1140
  %1644 = vmatprep.subr.bf16.mxu0 %v1137
  %1645 = vmatpush1.bf16.msra.mxu0 %v1136
  %1646 = vmatprep.subr.bf16.mxu0 %v1133
  %1647 = vmatpush1.bf16.msra.mxu0 %v1132
  %1648 = vmatprep.subr.bf16.mxu0 %v1129
  %1649 = vmatpush1.bf16.msra.mxu0 %v1128
  %1650 = vmatprep.subr.bf16.mxu0 %v1125
  %1651 = vmatpush1.bf16.msra.mxu0 %v1124
  %1652 = vmatprep.subr.bf16.mxu0 %v1185
  %1653 = vmatpush2.bf16.msra.mxu0 %v1184
  %1654 = vmatprep.subr.bf16.mxu0 %v1181
  %1655 = vmatpush2.bf16.msra.mxu0 %v1180
  %1656 = vmatprep.subr.bf16.mxu0 %v1177
  %1657 = vmatpush2.bf16.msra.mxu0 %v1176
  %1658 = vmatprep.subr.bf16.mxu0 %v1173
  %1659 = vmatpush2.bf16.msra.mxu0 %v1172
  %1660 = vmatprep.subr.bf16.mxu0 %v1169
  %1661 = vmatpush2.bf16.msra.mxu0 %v1168
  %1662 = vmatprep.subr.bf16.mxu0 %v1165
  %1663 = vmatpush2.bf16.msra.mxu0 %v1164
  %1664 = vmatprep.subr.bf16.mxu0 %v1161
  %1665 = vmatpush2.bf16.msra.mxu0 %v1160
  %1666 = vmatprep.subr.bf16.mxu0 %v1157
  %1667 = vmatpush2.bf16.msra.mxu0 %v1156
  %1668 = vmatprep.mubr.bf16.mxu0 %v71
  %1669 = vmatmul.mubr.bf16.gmra.mxu0 %v70
  %v1670 = vpop.f32.mrf.mxu0
  %v1671 = vadd.f32 %v339, %v1670
  %v1672 = vpop.f32.mrf.mxu0
  %v1673 = vadd.f32 %v343, %v1672
  %v1674 = vpop.f32.mrf.mxu0
  %v1675 = vpop.f32.mrf.mxu0
  %1676 = vdwg.mxu0
  %1677 = vmatprep.subr.bf16.mxu0 %v1217
  %1678 = vmatpush1.bf16.msra.mxu0 %v1216
  %1679 = vmatprep.subr.bf16.mxu0 %v1213
  %1680 = vmatpush1.bf16.msra.mxu0 %v1212
  %1681 = vmatprep.subr.bf16.mxu0 %v1209
  %1682 = vmatpush1.bf16.msra.mxu0 %v1208
  %1683 = vmatprep.subr.bf16.mxu0 %v1205
  %1684 = vmatpush1.bf16.msra.mxu0 %v1204
  %1685 = vmatprep.subr.bf16.mxu0 %v1201
  %1686 = vmatpush1.bf16.msra.mxu0 %v1200
  %1687 = vmatprep.subr.bf16.mxu0 %v1197
  %1688 = vmatpush1.bf16.msra.mxu0 %v1196
  %1689 = vmatprep.subr.bf16.mxu0 %v1193
  %1690 = vmatpush1.bf16.msra.mxu0 %v1192
  %1691 = vmatprep.subr.bf16.mxu0 %v1189
  %1692 = vmatpush1.bf16.msra.mxu0 %v1188
  %1693 = vmatprep.subr.bf16.mxu0 %v1249
  %1694 = vmatpush2.bf16.msra.mxu0 %v1248
  %1695 = vmatprep.subr.bf16.mxu0 %v1245
  %1696 = vmatpush2.bf16.msra.mxu0 %v1244
  %1697 = vmatprep.subr.bf16.mxu0 %v1241
  %1698 = vmatpush2.bf16.msra.mxu0 %v1240
  %1699 = vmatprep.subr.bf16.mxu0 %v1237
  %1700 = vmatpush2.bf16.msra.mxu0 %v1236
  %1701 = vmatprep.subr.bf16.mxu0 %v1233
  %1702 = vmatpush2.bf16.msra.mxu0 %v1232
  %1703 = vmatprep.subr.bf16.mxu0 %v1229
  %1704 = vmatpush2.bf16.msra.mxu0 %v1228
  %1705 = vmatprep.subr.bf16.mxu0 %v1225
  %1706 = vmatpush2.bf16.msra.mxu0 %v1224
  %1707 = vmatprep.subr.bf16.mxu0 %v1221
  %1708 = vmatpush2.bf16.msra.mxu0 %v1220
  %1709 = vmatprep.mubr.bf16.mxu0 %v73
  %1710 = vmatmul.mubr.bf16.gmra.mxu0 %v72
  %v1711 = vpop.f32.mrf.mxu0
  %v1712 = vadd.f32 %v1671, %v1711
  %v1713 = vpop.f32.mrf.mxu0
  %v1714 = vadd.f32 %v1673, %v1713
  %v1715 = vpop.f32.mrf.mxu0
  %v1716 = vpop.f32.mrf.mxu0
  %1717 = vdwg.mxu0
  %1718 = vmatprep.subr.bf16.mxu0 %v1281
  %1719 = vmatpush1.bf16.msra.mxu0 %v1280
  %1720 = vmatprep.subr.bf16.mxu0 %v1277
  %1721 = vmatpush1.bf16.msra.mxu0 %v1276
  %1722 = vmatprep.subr.bf16.mxu0 %v1273
  %1723 = vmatpush1.bf16.msra.mxu0 %v1272
  %1724 = vmatprep.subr.bf16.mxu0 %v1269
  %1725 = vmatpush1.bf16.msra.mxu0 %v1268
  %1726 = vmatprep.subr.bf16.mxu0 %v1265
  %1727 = vmatpush1.bf16.msra.mxu0 %v1264
  %1728 = vmatprep.subr.bf16.mxu0 %v1261
  %1729 = vmatpush1.bf16.msra.mxu0 %v1260
  %1730 = vmatprep.subr.bf16.mxu0 %v1257
  %1731 = vmatpush1.bf16.msra.mxu0 %v1256
  %1732 = vmatprep.subr.bf16.mxu0 %v1253
  %1733 = vmatpush1.bf16.msra.mxu0 %v1252
  %1734 = vmatprep.subr.bf16.mxu0 %v1313
  %1735 = vmatpush2.bf16.msra.mxu0 %v1312
  %1736 = vmatprep.subr.bf16.mxu0 %v1309
  %1737 = vmatpush2.bf16.msra.mxu0 %v1308
  %1738 = vmatprep.subr.bf16.mxu0 %v1305
  %1739 = vmatpush2.bf16.msra.mxu0 %v1304
  %1740 = vmatprep.subr.bf16.mxu0 %v1301
  %1741 = vmatpush2.bf16.msra.mxu0 %v1300
  %1742 = vmatprep.subr.bf16.mxu0 %v1297
  %1743 = vmatpush2.bf16.msra.mxu0 %v1296
  %1744 = vmatprep.subr.bf16.mxu0 %v1293
  %1745 = vmatpush2.bf16.msra.mxu0 %v1292
  %1746 = vmatprep.subr.bf16.mxu0 %v1289
  %1747 = vmatpush2.bf16.msra.mxu0 %v1288
  %1748 = vmatprep.subr.bf16.mxu0 %v1285
  %1749 = vmatpush2.bf16.msra.mxu0 %v1284
  %1750 = vmatprep.mubr.bf16.mxu0 %v75
  %1751 = vmatmul.mubr.bf16.gmra.mxu0 %v74
  %v1752 = vpop.f32.mrf.mxu0
  %v1753 = vadd.f32 %v1712, %v1752
  %v1754 = vpop.f32.mrf.mxu0
  %v1755 = vadd.f32 %v1714, %v1754
  %v1756 = vpop.f32.mrf.mxu0
  %v1757 = vpop.f32.mrf.mxu0
  %1758 = vdwg.mxu0
  %1759 = vmatprep.subr.bf16.mxu0 %v1345
  %1760 = vmatpush1.bf16.msra.mxu0 %v1344
  %1761 = vmatprep.subr.bf16.mxu0 %v1341
  %1762 = vmatpush1.bf16.msra.mxu0 %v1340
  %1763 = vmatprep.subr.bf16.mxu0 %v1337
  %1764 = vmatpush1.bf16.msra.mxu0 %v1336
  %1765 = vmatprep.subr.bf16.mxu0 %v1333
  %1766 = vmatpush1.bf16.msra.mxu0 %v1332
  %1767 = vmatprep.subr.bf16.mxu0 %v1329
  %1768 = vmatpush1.bf16.msra.mxu0 %v1328
  %1769 = vmatprep.subr.bf16.mxu0 %v1325
  %1770 = vmatpush1.bf16.msra.mxu0 %v1324
  %1771 = vmatprep.subr.bf16.mxu0 %v1321
  %1772 = vmatpush1.bf16.msra.mxu0 %v1320
  %1773 = vmatprep.subr.bf16.mxu0 %v1317
  %1774 = vmatpush1.bf16.msra.mxu0 %v1316
  %1775 = vmatprep.subr.bf16.mxu0 %v1377
  %1776 = vmatpush2.bf16.msra.mxu0 %v1376
  %1777 = vmatprep.subr.bf16.mxu0 %v1373
  %1778 = vmatpush2.bf16.msra.mxu0 %v1372
  %1779 = vmatprep.subr.bf16.mxu0 %v1369
  %1780 = vmatpush2.bf16.msra.mxu0 %v1368
  %1781 = vmatprep.subr.bf16.mxu0 %v1365
  %1782 = vmatpush2.bf16.msra.mxu0 %v1364
  %1783 = vmatprep.subr.bf16.mxu0 %v1361
  %1784 = vmatpush2.bf16.msra.mxu0 %v1360
  %1785 = vmatprep.subr.bf16.mxu0 %v1357
  %1786 = vmatpush2.bf16.msra.mxu0 %v1356
  %1787 = vmatprep.subr.bf16.mxu0 %v1353
  %1788 = vmatpush2.bf16.msra.mxu0 %v1352
  %1789 = vmatprep.subr.bf16.mxu0 %v1349
  %1790 = vmatpush2.bf16.msra.mxu0 %v1348
  %1791 = vmatprep.mubr.bf16.mxu0 %v77
  %1792 = vmatmul.mubr.bf16.gmra.mxu0 %v76
  %v1793 = vpop.f32.mrf.mxu0
  %v1794 = vadd.f32 %v1753, %v1793
  %v1795 = vpop.f32.mrf.mxu0
  %v1796 = vadd.f32 %v1755, %v1795
  %v1797 = vpop.f32.mrf.mxu0
  %v1798 = vpop.f32.mrf.mxu0
  %1799 = vdwg.mxu0
  %1800 = vmatprep.subr.bf16.mxu0 %v1155
  %1801 = vmatpush1.bf16.msra.mxu0 %v1154
  %1802 = vmatprep.subr.bf16.mxu0 %v1151
  %1803 = vmatpush1.bf16.msra.mxu0 %v1150
  %1804 = vmatprep.subr.bf16.mxu0 %v1147
  %1805 = vmatpush1.bf16.msra.mxu0 %v1146
  %1806 = vmatprep.subr.bf16.mxu0 %v1143
  %1807 = vmatpush1.bf16.msra.mxu0 %v1142
  %1808 = vmatprep.subr.bf16.mxu0 %v1139
  %1809 = vmatpush1.bf16.msra.mxu0 %v1138
  %1810 = vmatprep.subr.bf16.mxu0 %v1135
  %1811 = vmatpush1.bf16.msra.mxu0 %v1134
  %1812 = vmatprep.subr.bf16.mxu0 %v1131
  %1813 = vmatpush1.bf16.msra.mxu0 %v1130
  %1814 = vmatprep.subr.bf16.mxu0 %v1127
  %1815 = vmatpush1.bf16.msra.mxu0 %v1126
  %1816 = vmatprep.subr.bf16.mxu0 %v1187
  %1817 = vmatpush2.bf16.msra.mxu0 %v1186
  %1818 = vmatprep.subr.bf16.mxu0 %v1183
  %1819 = vmatpush2.bf16.msra.mxu0 %v1182
  %1820 = vmatprep.subr.bf16.mxu0 %v1179
  %1821 = vmatpush2.bf16.msra.mxu0 %v1178
  %1822 = vmatprep.subr.bf16.mxu0 %v1175
  %1823 = vmatpush2.bf16.msra.mxu0 %v1174
  %1824 = vmatprep.subr.bf16.mxu0 %v1171
  %1825 = vmatpush2.bf16.msra.mxu0 %v1170
  %1826 = vmatprep.subr.bf16.mxu0 %v1167
  %1827 = vmatpush2.bf16.msra.mxu0 %v1166
  %1828 = vmatprep.subr.bf16.mxu0 %v1163
  %1829 = vmatpush2.bf16.msra.mxu0 %v1162
  %1830 = vmatprep.subr.bf16.mxu0 %v1159
  %1831 = vmatpush2.bf16.msra.mxu0 %v1158
  %1832 = vmatprep.mubr.bf16.mxu0 %v71
  %1833 = vmatmul.mubr.bf16.gmra.mxu0 %v70
  %v1834 = vpop.f32.mrf.mxu0
  %v1835 = vadd.f32 %v347, %v1834
  %v1836 = vpop.f32.mrf.mxu0
  %v1837 = vadd.f32 %v351, %v1836
  %v1838 = vpop.f32.mrf.mxu0
  %v1839 = vpop.f32.mrf.mxu0
  %1840 = vdwg.mxu0
  %1841 = vmatprep.subr.bf16.mxu0 %v1219
  %1842 = vmatpush1.bf16.msra.mxu0 %v1218
  %1843 = vmatprep.subr.bf16.mxu0 %v1215
  %1844 = vmatpush1.bf16.msra.mxu0 %v1214
  %1845 = vmatprep.subr.bf16.mxu0 %v1211
  %1846 = vmatpush1.bf16.msra.mxu0 %v1210
  %1847 = vmatprep.subr.bf16.mxu0 %v1207
  %1848 = vmatpush1.bf16.msra.mxu0 %v1206
  %1849 = vmatprep.subr.bf16.mxu0 %v1203
  %1850 = vmatpush1.bf16.msra.mxu0 %v1202
  %1851 = vmatprep.subr.bf16.mxu0 %v1199
  %1852 = vmatpush1.bf16.msra.mxu0 %v1198
  %1853 = vmatprep.subr.bf16.mxu0 %v1195
  %1854 = vmatpush1.bf16.msra.mxu0 %v1194
  %1855 = vmatprep.subr.bf16.mxu0 %v1191
  %1856 = vmatpush1.bf16.msra.mxu0 %v1190
  %1857 = vmatprep.subr.bf16.mxu0 %v1251
  %1858 = vmatpush2.bf16.msra.mxu0 %v1250
  %1859 = vmatprep.subr.bf16.mxu0 %v1247
  %1860 = vmatpush2.bf16.msra.mxu0 %v1246
  %1861 = vmatprep.subr.bf16.mxu0 %v1243
  %1862 = vmatpush2.bf16.msra.mxu0 %v1242
  %1863 = vmatprep.subr.bf16.mxu0 %v1239
  %1864 = vmatpush2.bf16.msra.mxu0 %v1238
  %1865 = vmatprep.subr.bf16.mxu0 %v1235
  %1866 = vmatpush2.bf16.msra.mxu0 %v1234
  %1867 = vmatprep.subr.bf16.mxu0 %v1231
  %1868 = vmatpush2.bf16.msra.mxu0 %v1230
  %1869 = vmatprep.subr.bf16.mxu0 %v1227
  %1870 = vmatpush2.bf16.msra.mxu0 %v1226
  %1871 = vmatprep.subr.bf16.mxu0 %v1223
  %1872 = vmatpush2.bf16.msra.mxu0 %v1222
  %1873 = vmatprep.mubr.bf16.mxu0 %v73
  %1874 = vmatmul.mubr.bf16.gmra.mxu0 %v72
  %v1875 = vpop.f32.mrf.mxu0
  %v1876 = vadd.f32 %v1835, %v1875
  %v1877 = vpop.f32.mrf.mxu0
  %v1878 = vadd.f32 %v1837, %v1877
  %v1879 = vpop.f32.mrf.mxu0
  %v1880 = vpop.f32.mrf.mxu0
  %1881 = vdwg.mxu0
  %1882 = vmatprep.subr.bf16.mxu0 %v1283
  %1883 = vmatpush1.bf16.msra.mxu0 %v1282
  %1884 = vmatprep.subr.bf16.mxu0 %v1279
  %1885 = vmatpush1.bf16.msra.mxu0 %v1278
  %1886 = vmatprep.subr.bf16.mxu0 %v1275
  %1887 = vmatpush1.bf16.msra.mxu0 %v1274
  %1888 = vmatprep.subr.bf16.mxu0 %v1271
  %1889 = vmatpush1.bf16.msra.mxu0 %v1270
  %1890 = vmatprep.subr.bf16.mxu0 %v1267
  %1891 = vmatpush1.bf16.msra.mxu0 %v1266
  %1892 = vmatprep.subr.bf16.mxu0 %v1263
  %1893 = vmatpush1.bf16.msra.mxu0 %v1262
  %1894 = vmatprep.subr.bf16.mxu0 %v1259
  %1895 = vmatpush1.bf16.msra.mxu0 %v1258
  %1896 = vmatprep.subr.bf16.mxu0 %v1255
  %1897 = vmatpush1.bf16.msra.mxu0 %v1254
  %1898 = vmatprep.subr.bf16.mxu0 %v1315
  %1899 = vmatpush2.bf16.msra.mxu0 %v1314
  %1900 = vmatprep.subr.bf16.mxu0 %v1311
  %1901 = vmatpush2.bf16.msra.mxu0 %v1310
  %1902 = vmatprep.subr.bf16.mxu0 %v1307
  %1903 = vmatpush2.bf16.msra.mxu0 %v1306
  %1904 = vmatprep.subr.bf16.mxu0 %v1303
  %1905 = vmatpush2.bf16.msra.mxu0 %v1302
  %1906 = vmatprep.subr.bf16.mxu0 %v1299
  %1907 = vmatpush2.bf16.msra.mxu0 %v1298
  %1908 = vmatprep.subr.bf16.mxu0 %v1295
  %1909 = vmatpush2.bf16.msra.mxu0 %v1294
  %1910 = vmatprep.subr.bf16.mxu0 %v1291
  %1911 = vmatpush2.bf16.msra.mxu0 %v1290
  %1912 = vmatprep.subr.bf16.mxu0 %v1287
  %1913 = vmatpush2.bf16.msra.mxu0 %v1286
  %1914 = vmatprep.mubr.bf16.mxu0 %v75
  %1915 = vmatmul.mubr.bf16.gmra.mxu0 %v74
  %v1916 = vpop.f32.mrf.mxu0
  %v1917 = vadd.f32 %v1876, %v1916
  %v1918 = vpop.f32.mrf.mxu0
  %v1919 = vadd.f32 %v1878, %v1918
  %v1920 = vpop.f32.mrf.mxu0
  %v1921 = vpop.f32.mrf.mxu0
  %1922 = vdwg.mxu0
  %1923 = vmatprep.subr.bf16.mxu0 %v1347
  %1924 = vmatpush1.bf16.msra.mxu0 %v1346
  %1925 = vmatprep.subr.bf16.mxu0 %v1343
  %1926 = vmatpush1.bf16.msra.mxu0 %v1342
  %1927 = vmatprep.subr.bf16.mxu0 %v1339
  %1928 = vmatpush1.bf16.msra.mxu0 %v1338
  %1929 = vmatprep.subr.bf16.mxu0 %v1335
  %1930 = vmatpush1.bf16.msra.mxu0 %v1334
  %1931 = vmatprep.subr.bf16.mxu0 %v1331
  %1932 = vmatpush1.bf16.msra.mxu0 %v1330
  %1933 = vmatprep.subr.bf16.mxu0 %v1327
  %1934 = vmatpush1.bf16.msra.mxu0 %v1326
  %1935 = vmatprep.subr.bf16.mxu0 %v1323
  %1936 = vmatpush1.bf16.msra.mxu0 %v1322
  %1937 = vmatprep.subr.bf16.mxu0 %v1319
  %1938 = vmatpush1.bf16.msra.mxu0 %v1318
  %1939 = vmatprep.subr.bf16.mxu0 %v1379
  %1940 = vmatpush2.bf16.msra.mxu0 %v1378
  %1941 = vmatprep.subr.bf16.mxu0 %v1375
  %1942 = vmatpush2.bf16.msra.mxu0 %v1374
  %1943 = vmatprep.subr.bf16.mxu0 %v1371
  %1944 = vmatpush2.bf16.msra.mxu0 %v1370
  %1945 = vmatprep.subr.bf16.mxu0 %v1367
  %1946 = vmatpush2.bf16.msra.mxu0 %v1366
  %1947 = vmatprep.subr.bf16.mxu0 %v1363
  %1948 = vmatpush2.bf16.msra.mxu0 %v1362
  %1949 = vmatprep.subr.bf16.mxu0 %v1359
  %1950 = vmatpush2.bf16.msra.mxu0 %v1358
  %1951 = vmatprep.subr.bf16.mxu0 %v1355
  %1952 = vmatpush2.bf16.msra.mxu0 %v1354
  %1953 = vmatprep.subr.bf16.mxu0 %v1351
  %1954 = vmatpush2.bf16.msra.mxu0 %v1350
  %1955 = vmatprep.mubr.bf16.mxu0 %v77
  %1956 = vmatmul.mubr.bf16.gmra.mxu0 %v76
  %v1957 = vpop.f32.mrf.mxu0
  %v1958 = vadd.f32 %v1917, %v1957
  %v1959 = vpop.f32.mrf.mxu0
  %v1960 = vadd.f32 %v1919, %v1959
  %v1961 = vpop.f32.mrf.mxu0
  %v1962 = vpop.f32.mrf.mxu0
  %1963 = vdwg.mxu0
  %v1964 = vmax.f32 %v1794, 0.0
  %v1965 = vmax.f32 %v1796, 0.0
  %v1966 = vmax.f32 %v1958, 0.0
  %v1967 = vmax.f32 %v1960, 0.0
  %v1968 = vpack.c.bf16 %v1964, %v1964
  %v1969 = vpack.c.bf16 %v1965, %v1965
  %v1970 = vpack.c.bf16 %v1966, %v1966
  %v1971 = vpack.c.bf16 %v1967, %v1967
  %v1972 = vld [vmem:[%s4] sm:$0xff]
  %v1973 = vld [vmem:[%s4 + $0x8] sm:$0xff]
  %v1974 = vld [vmem:[%s4 + $0x10] sm:$0xff]
  %v1975 = vld [vmem:[%s4 + $0x18] sm:$0xff]
  %v1976 = vld [vmem:[%s4 + $0x20] sm:$0xff]
  %v1977 = vld [vmem:[%s4 + $0x28] sm:$0xff]
  %v1978 = vld [vmem:[%s4 + $0x30] sm:$0xff]
  %v1979 = vld [vmem:[%s4 + $0x38] sm:$0xff]
  %v1980 = vld [vmem:[%s4 + $0x40] sm:$0xff]
  %v1981 = vld [vmem:[%s4 + $0x48] sm:$0xff]
  %v1982 = vld [vmem:[%s4 + $0x50] sm:$0xff]
  %v1983 = vld [vmem:[%s4 + $0x58] sm:$0xff]
  %v1984 = vld [vmem:[%s4 + $0x60] sm:$0xff]
  %v1985 = vld [vmem:[%s4 + $0x68] sm:$0xff]
  %v1986 = vld [vmem:[%s4 + $0x70] sm:$0xff]
  %v1987 = vld [vmem:[%s4 + $0x78] sm:$0xff]
  %v1988 = vld [vmem:[%s4 + $0x80] sm:$0xff]
  %v1989 = vld [vmem:[%s4 + $0x88] sm:$0xff]
  %v1990 = vld [vmem:[%s4 + $0x90] sm:$0xff]
  %v1991 = vld [vmem:[%s4 + $0x98] sm:$0xff]
  %v1992 = vld [vmem:[%s4 + $0xa0] sm:$0xff]
  %v1993 = vld [vmem:[%s4 + $0xa8] sm:$0xff]
  %v1994 = vld [vmem:[%s4 + $0xb0] sm:$0xff]
  %v1995 = vld [vmem:[%s4 + $0xb8] sm:$0xff]
  %v1996 = vld [vmem:[%s4 + $0xc0] sm:$0xff]
  %v1997 = vld [vmem:[%s4 + $0xc8] sm:$0xff]
  %v1998 = vld [vmem:[%s4 + $0xd0] sm:$0xff]
  %v1999 = vld [vmem:[%s4 + $0xd8] sm:$0xff]
  %v2000 = vld [vmem:[%s4 + $0xe0] sm:$0xff]
  %v2001 = vld [vmem:[%s4 + $0xe8] sm:$0xff]
  %v2002 = vld [vmem:[%s4 + $0xf0] sm:$0xff]
  %v2003 = vld [vmem:[%s4 + $0xf8] sm:$0xff]
  %v2004 = vld [vmem:[%s4 + $0x100] sm:$0xff]
  %v2005 = vld [vmem:[%s4 + $0x108] sm:$0xff]
  %v2006 = vld [vmem:[%s4 + $0x110] sm:$0xff]
  %v2007 = vld [vmem:[%s4 + $0x118] sm:$0xff]
  %v2008 = vld [vmem:[%s4 + $0x120] sm:$0xff]
  %v2009 = vld [vmem:[%s4 + $0x128] sm:$0xff]
  %v2010 = vld [vmem:[%s4 + $0x130] sm:$0xff]
  %v2011 = vld [vmem:[%s4 + $0x138] sm:$0xff]
  %v2012 = vld [vmem:[%s4 + $0x140] sm:$0xff]
  %v2013 = vld [vmem:[%s4 + $0x148] sm:$0xff]
  %v2014 = vld [vmem:[%s4 + $0x150] sm:$0xff]
  %v2015 = vld [vmem:[%s4 + $0x158] sm:$0xff]
  %v2016 = vld [vmem:[%s4 + $0x160] sm:$0xff]
  %v2017 = vld [vmem:[%s4 + $0x168] sm:$0xff]
  %v2018 = vld [vmem:[%s4 + $0x170] sm:$0xff]
  %v2019 = vld [vmem:[%s4 + $0x178] sm:$0xff]
  %v2020 = vld [vmem:[%s4 + $0x180] sm:$0xff]
  %v2021 = vld [vmem:[%s5] sm:$0x3]
  %v2023 = vlaneseq
  %v2024 = vshrl.u32 %v2023, 7
  %v2025 = vsub.s32 0, %v2024
  %v2026 = vrot.slane %v2021, %v2025
  %v2027 = vlaneseq
  %v2028 = vshrl.u32 %v2027, 7
  %v2029 = vsub.s32 1, %v2028
  %v2030 = vrot.slane %v2021, %v2029
  %v2082 = vunpack.c.l.b16 %v1972
  %v2083 = vunpack.c.h.b16 %v1972
  %v2084 = vunpack.c.l.b16 %v1973
  %v2085 = vunpack.c.h.b16 %v1973
  %v2086 = vunpack.c.l.b16 %v1974
  %v2087 = vunpack.c.h.b16 %v1974
  %v2088 = vunpack.c.l.b16 %v1975
  %v2089 = vunpack.c.h.b16 %v1975
  %v2090 = vunpack.c.l.b16 %v1976
  %v2091 = vunpack.c.h.b16 %v1976
  %v2092 = vunpack.c.l.b16 %v1977
  %v2093 = vunpack.c.h.b16 %v1977
  %v2094 = vunpack.c.l.b16 %v1978
  %v2095 = vunpack.c.h.b16 %v1978
  %v2096 = vunpack.c.l.b16 %v1979
  %v2097 = vunpack.c.h.b16 %v1979
  %v2098 = vunpack.c.l.b16 %v1980
  %v2099 = vunpack.c.h.b16 %v1980
  %v2100 = vunpack.c.l.b16 %v1981
  %v2101 = vunpack.c.h.b16 %v1981
  %v2102 = vunpack.c.l.b16 %v1982
  %v2103 = vunpack.c.h.b16 %v1982
  %v2104 = vunpack.c.l.b16 %v1983
  %v2105 = vunpack.c.h.b16 %v1983
  %v2106 = vunpack.c.l.b16 %v1984
  %v2107 = vunpack.c.h.b16 %v1984
  %v2108 = vunpack.c.l.b16 %v1985
  %v2109 = vunpack.c.h.b16 %v1985
  %v2110 = vunpack.c.l.b16 %v1986
  %v2111 = vunpack.c.h.b16 %v1986
  %v2112 = vunpack.c.l.b16 %v1987
  %v2113 = vunpack.c.h.b16 %v1987
  %v2114 = vunpack.c.l.b16 %v1988
  %v2115 = vunpack.c.h.b16 %v1988
  %v2116 = vunpack.c.l.b16 %v1989
  %v2117 = vunpack.c.h.b16 %v1989
  %v2118 = vunpack.c.l.b16 %v1990
  %v2119 = vunpack.c.h.b16 %v1990
  %v2120 = vunpack.c.l.b16 %v1991
  %v2121 = vunpack.c.h.b16 %v1991
  %v2122 = vunpack.c.l.b16 %v1992
  %v2123 = vunpack.c.h.b16 %v1992
  %v2124 = vunpack.c.l.b16 %v1993
  %v2125 = vunpack.c.h.b16 %v1993
  %v2126 = vunpack.c.l.b16 %v1994
  %v2127 = vunpack.c.h.b16 %v1994
  %v2128 = vunpack.c.l.b16 %v1995
  %v2129 = vunpack.c.h.b16 %v1995
  %v2130 = vunpack.c.l.b16 %v1996
  %v2131 = vunpack.c.h.b16 %v1996
  %v2132 = vunpack.c.l.b16 %v1997
  %v2133 = vunpack.c.h.b16 %v1997
  %v2134 = vunpack.c.l.b16 %v1998
  %v2135 = vunpack.c.h.b16 %v1998
  %v2136 = vunpack.c.l.b16 %v1999
  %v2137 = vunpack.c.h.b16 %v1999
  %v2138 = vunpack.c.l.b16 %v2000
  %v2139 = vunpack.c.h.b16 %v2000
  %v2140 = vunpack.c.l.b16 %v2001
  %v2141 = vunpack.c.h.b16 %v2001
  %v2142 = vunpack.c.l.b16 %v2002
  %v2143 = vunpack.c.h.b16 %v2002
  %v2144 = vunpack.c.l.b16 %v2003
  %v2145 = vunpack.c.h.b16 %v2003
  %v2146 = vunpack.c.l.b16 %v2004
  %v2147 = vunpack.c.h.b16 %v2004
  %v2148 = vunpack.c.l.b16 %v2005
  %v2149 = vunpack.c.h.b16 %v2005
  %v2150 = vunpack.c.l.b16 %v2006
  %v2151 = vunpack.c.h.b16 %v2006
  %v2152 = vunpack.c.l.b16 %v2007
  %v2153 = vunpack.c.h.b16 %v2007
  %v2154 = vunpack.c.l.b16 %v2008
  %v2155 = vunpack.c.h.b16 %v2008
  %v2156 = vunpack.c.l.b16 %v2009
  %v2157 = vunpack.c.h.b16 %v2009
  %v2158 = vunpack.c.l.b16 %v2010
  %v2159 = vunpack.c.h.b16 %v2010
  %v2160 = vunpack.c.l.b16 %v2011
  %v2161 = vunpack.c.h.b16 %v2011
  %v2162 = vunpack.c.l.b16 %v2012
  %v2163 = vunpack.c.h.b16 %v2012
  %v2164 = vunpack.c.l.b16 %v2013
  %v2165 = vunpack.c.h.b16 %v2013
  %v2166 = vunpack.c.l.b16 %v2014
  %v2167 = vunpack.c.h.b16 %v2014
  %v2168 = vunpack.c.l.b16 %v2015
  %v2169 = vunpack.c.h.b16 %v2015
  %v2170 = vunpack.c.l.b16 %v2016
  %v2171 = vunpack.c.h.b16 %v2016
  %v2172 = vunpack.c.l.b16 %v2017
  %v2173 = vunpack.c.h.b16 %v2017
  %v2174 = vunpack.c.l.b16 %v2018
  %v2175 = vunpack.c.h.b16 %v2018
  %v2176 = vunpack.c.l.b16 %v2019
  %v2177 = vunpack.c.h.b16 %v2019
  %v2178 = vunpack.c.l.b16 %v2020
  %v2179 = vunpack.c.h.b16 %v2020
  %v2180 = vpack.c.b16 %v2084, %v2082
  %v2181 = vpack.c.b16 %v2085, %v2083
  %v2182 = vpack.c.b16 %v2088, %v2086
  %v2183 = vpack.c.b16 %v2089, %v2087
  %v2184 = vpack.c.b16 %v2092, %v2090
  %v2185 = vpack.c.b16 %v2093, %v2091
  %v2186 = vpack.c.b16 %v2096, %v2094
  %v2187 = vpack.c.b16 %v2097, %v2095
  %v2188 = vpack.c.b16 %v2100, %v2098
  %v2189 = vpack.c.b16 %v2101, %v2099
  %v2190 = vpack.c.b16 %v2104, %v2102
  %v2191 = vpack.c.b16 %v2105, %v2103
  %v2192 = vpack.c.b16 %v2108, %v2106
  %v2193 = vpack.c.b16 %v2109, %v2107
  %v2194 = vpack.c.b16 %v2112, %v2110
  %v2195 = vpack.c.b16 %v2113, %v2111
  %v2196 = vpack.c.b16 %v2116, %v2114
  %v2197 = vpack.c.b16 %v2117, %v2115
  %v2198 = vpack.c.b16 %v2120, %v2118
  %v2199 = vpack.c.b16 %v2121, %v2119
  %v2200 = vpack.c.b16 %v2124, %v2122
  %v2201 = vpack.c.b16 %v2125, %v2123
  %v2202 = vpack.c.b16 %v2128, %v2126
  %v2203 = vpack.c.b16 %v2129, %v2127
  %v2204 = vpack.c.b16 %v2132, %v2130
  %v2205 = vpack.c.b16 %v2133, %v2131
  %v2206 = vpack.c.b16 %v2136, %v2134
  %v2207 = vpack.c.b16 %v2137, %v2135
  %v2208 = vpack.c.b16 %v2140, %v2138
  %v2209 = vpack.c.b16 %v2141, %v2139
  %v2210 = vpack.c.b16 %v2144, %v2142
  %v2211 = vpack.c.b16 %v2145, %v2143
  %v2212 = vpack.c.b16 %v2148, %v2146
  %v2213 = vpack.c.b16 %v2149, %v2147
  %v2214 = vpack.c.b16 %v2152, %v2150
  %v2215 = vpack.c.b16 %v2153, %v2151
  %v2216 = vpack.c.b16 %v2156, %v2154
  %v2217 = vpack.c.b16 %v2157, %v2155
  %v2218 = vpack.c.b16 %v2160, %v2158
  %v2219 = vpack.c.b16 %v2161, %v2159
  %v2220 = vpack.c.b16 %v2164, %v2162
  %v2221 = vpack.c.b16 %v2165, %v2163
  %v2222 = vpack.c.b16 %v2168, %v2166
  %v2223 = vpack.c.b16 %v2169, %v2167
  %v2224 = vpack.c.b16 %v2172, %v2170
  %v2225 = vpack.c.b16 %v2173, %v2171
  %v2226 = vpack.c.b16 %v2176, %v2174
  %v2227 = vpack.c.b16 %v2177, %v2175
  %v2228 = vpack.c.b16 %v2178, %v2178
  %v2229 = vpack.c.b16 %v2179, %v2179
  %vm2278 = vcmask 64512
  %v2280 = vsel %vm2278, %v1971, 0
  %vm2282 = vcmask 1043456
  %v2284 = vsel %vm2282, %v2228, 0
  %v2287 = vsel %vm2282, %v2229, 0
  %2289 = vmatprep.subr.bf16.mxu0 %v2195
  %2290 = vmatpush1.bf16.msra.mxu0 %v2194
  %2291 = vmatprep.subr.bf16.mxu0 %v2193
  %2292 = vmatpush1.bf16.msra.mxu0 %v2192
  %2293 = vmatprep.subr.bf16.mxu0 %v2191
  %2294 = vmatpush1.bf16.msra.mxu0 %v2190
  %2295 = vmatprep.subr.bf16.mxu0 %v2189
  %2296 = vmatpush1.bf16.msra.mxu0 %v2188
  %2297 = vmatprep.subr.bf16.mxu0 %v2187
  %2298 = vmatpush1.bf16.msra.mxu0 %v2186
  %2299 = vmatprep.subr.bf16.mxu0 %v2185
  %2300 = vmatpush1.bf16.msra.mxu0 %v2184
  %2301 = vmatprep.subr.bf16.mxu0 %v2183
  %2302 = vmatpush1.bf16.msra.mxu0 %v2182
  %2303 = vmatprep.subr.bf16.mxu0 %v2181
  %2304 = vmatpush1.bf16.msra.mxu0 %v2180
  %2305 = vmatprep.subr.bf16.mxu0 %v2211
  %2306 = vmatpush2.bf16.msra.mxu0 %v2210
  %2307 = vmatprep.subr.bf16.mxu0 %v2209
  %2308 = vmatpush2.bf16.msra.mxu0 %v2208
  %2309 = vmatprep.subr.bf16.mxu0 %v2207
  %2310 = vmatpush2.bf16.msra.mxu0 %v2206
  %2311 = vmatprep.subr.bf16.mxu0 %v2205
  %2312 = vmatpush2.bf16.msra.mxu0 %v2204
  %2313 = vmatprep.subr.bf16.mxu0 %v2203
  %2314 = vmatpush2.bf16.msra.mxu0 %v2202
  %2315 = vmatprep.subr.bf16.mxu0 %v2201
  %2316 = vmatpush2.bf16.msra.mxu0 %v2200
  %2317 = vmatprep.subr.bf16.mxu0 %v2199
  %2318 = vmatpush2.bf16.msra.mxu0 %v2198
  %2319 = vmatprep.subr.bf16.mxu0 %v2197
  %2320 = vmatpush2.bf16.msra.mxu0 %v2196
  %2321 = vmatprep.mubr.bf16.mxu0 %v1969
  %2322 = vmatmul.mubr.bf16.gmra.mxu0 %v1968
  %v2323 = vpop.f32.mrf.mxu0
  %v2324 = vadd.f32 %v2026, %v2323
  %v2325 = vpop.f32.mrf.mxu0
  %v2326 = vadd.f32 %v2030, %v2325
  %v2327 = vpop.f32.mrf.mxu0
  %v2328 = vpop.f32.mrf.mxu0
  %2329 = vdwg.mxu0
  %2330 = vmatprep.subr.bf16.mxu0 %v2227
  %2331 = vmatpush1.bf16.msra.mxu0 %v2226
  %2332 = vmatprep.subr.bf16.mxu0 %v2225
  %2333 = vmatpush1.bf16.msra.mxu0 %v2224
  %2334 = vmatprep.subr.bf16.mxu0 %v2223
  %2335 = vmatpush1.bf16.msra.mxu0 %v2222
  %2336 = vmatprep.subr.bf16.mxu0 %v2221
  %2337 = vmatpush1.bf16.msra.mxu0 %v2220
  %2338 = vmatprep.subr.bf16.mxu0 %v2219
  %2339 = vmatpush1.bf16.msra.mxu0 %v2218
  %2340 = vmatprep.subr.bf16.mxu0 %v2217
  %2341 = vmatpush1.bf16.msra.mxu0 %v2216
  %2342 = vmatprep.subr.bf16.mxu0 %v2215
  %2343 = vmatpush1.bf16.msra.mxu0 %v2214
  %2344 = vmatprep.subr.bf16.mxu0 %v2213
  %2345 = vmatpush1.bf16.msra.mxu0 %v2212
  %2346 = vmatprep.subr.bf16.mxu0 0
  %2347 = vmatpush2.bf16.msra.mxu0 0
  %2348 = vmatprep.subr.bf16.mxu0 0
  %2349 = vmatpush2.bf16.msra.mxu0 0
  %2350 = vmatprep.subr.bf16.mxu0 0
  %2351 = vmatpush2.bf16.msra.mxu0 0
  %2352 = vmatprep.subr.bf16.mxu0 0
  %2353 = vmatpush2.bf16.msra.mxu0 0
  %2354 = vmatprep.subr.bf16.mxu0 0
  %2355 = vmatpush2.bf16.msra.mxu0 0
  %2356 = vmatprep.subr.bf16.mxu0 0
  %2357 = vmatpush2.bf16.msra.mxu0 0
  %2358 = vmatprep.subr.bf16.mxu0 0
  %2359 = vmatpush2.bf16.msra.mxu0 0
  %2360 = vmatprep.subr.bf16.mxu0 %v2287
  %2361 = vmatpush2.bf16.msra.mxu0 %v2284
  %2362 = vmatprep.mubr.bf16.mxu0 %v2280
  %2363 = vmatmul.mubr.bf16.gmra.mxu0 %v1970
  %v2364 = vpop.f32.mrf.mxu0
  %v2365 = vadd.f32 %v2324, %v2364
  %v2366 = vpop.f32.mrf.mxu0
  %v2367 = vadd.f32 %v2326, %v2366
  %v2368 = vpop.f32.mrf.mxu0
  %v2369 = vpop.f32.mrf.mxu0
  %2370 = vdwg.mxu0
  %v2371 = vmax.f32 %v2365, 0.0
  %v2372 = vmax.f32 %v2367, 0.0
  %v2373 = vpack.c.bf16 %v2371, %v2371
  %v2374 = vpack.c.bf16 %v2372, %v2372
  %v2375 = vld [vmem:[%s6] sm:$0xf]
  %v2376 = vld [vmem:[%s6 + $0x4] sm:$0xf]
  %v2377 = vld [vmem:[%s6 + $0x8] sm:$0xf]
  %v2378 = vld [vmem:[%s6 + $0xc] sm:$0xf]
  %v2379 = vld [vmem:[%s6 + $0x10] sm:$0xf]
  %v2380 = vld [vmem:[%s6 + $0x14] sm:$0xf]
  %v2381 = vld [vmem:[%s6 + $0x18] sm:$0xf]
  %v2382 = vld [vmem:[%s6 + $0x1c] sm:$0xf]
  %v2383 = vld [vmem:[%s6 + $0x20] sm:$0xf]
  %v2384 = vld [vmem:[%s6 + $0x24] sm:$0xf]
  %v2385 = vld [vmem:[%s6 + $0x28] sm:$0xf]
  %v2386 = vld [vmem:[%s6 + $0x2c] sm:$0xf]
  %v2387 = vld [vmem:[%s6 + $0x30] sm:$0xf]
  %v2388 = vld [vmem:[%s6 + $0x34] sm:$0xf]
  %v2389 = vld [vmem:[%s6 + $0x38] sm:$0xf]
  %v2390 = vld [vmem:[%s6 + $0x3c] sm:$0xf]
  %v2391 = vld [vmem:[%s6 + $0x40] sm:$0xf]
  %v2392 = vld [vmem:[%s6 + $0x44] sm:$0xf]
  %v2393 = vld [vmem:[%s6 + $0x48] sm:$0xf]
  %v2394 = vld [vmem:[%s6 + $0x4c] sm:$0xf]
  %v2395 = vld [vmem:[%s6 + $0x50] sm:$0xf]
  %v2396 = vld [vmem:[%s6 + $0x54] sm:$0xf]
  %v2397 = vld [vmem:[%s6 + $0x58] sm:$0xf]
  %v2398 = vld [vmem:[%s6 + $0x5c] sm:$0xf]
  %v2399 = vld [vmem:[%s6 + $0x60] sm:$0xf]
  %v2400 = vld [vmem:[%s7] sm:$0x1]
  %v2402 = vlaneseq
  %v2403 = vshrl.u32 %v2402, 7
  %v2404 = vsub.s32 0, %v2403
  %v2405 = vrot.slane %v2400, %v2404
  %v2432 = vunpack.c.l.b16 %v2375
  %v2433 = vunpack.c.l.b16 %v2376
  %v2434 = vunpack.c.l.b16 %v2377
  %v2435 = vunpack.c.l.b16 %v2378
  %v2436 = vunpack.c.l.b16 %v2379
  %v2437 = vunpack.c.l.b16 %v2380
  %v2438 = vunpack.c.l.b16 %v2381
  %v2439 = vunpack.c.l.b16 %v2382
  %v2440 = vunpack.c.l.b16 %v2383
  %v2441 = vunpack.c.l.b16 %v2384
  %v2442 = vunpack.c.l.b16 %v2385
  %v2443 = vunpack.c.l.b16 %v2386
  %v2444 = vunpack.c.l.b16 %v2387
  %v2445 = vunpack.c.l.b16 %v2388
  %v2446 = vunpack.c.l.b16 %v2389
  %v2447 = vunpack.c.l.b16 %v2390
  %v2448 = vunpack.c.l.b16 %v2391
  %v2449 = vunpack.c.l.b16 %v2392
  %v2450 = vunpack.c.l.b16 %v2393
  %v2451 = vunpack.c.l.b16 %v2394
  %v2452 = vunpack.c.l.b16 %v2395
  %v2453 = vunpack.c.l.b16 %v2396
  %v2454 = vunpack.c.l.b16 %v2397
  %v2455 = vunpack.c.l.b16 %v2398
  %v2456 = vunpack.c.l.b16 %v2399
  %v2457 = vpack.c.b16 %v2433, %v2432
  %v2458 = vpack.c.b16 %v2435, %v2434
  %v2459 = vpack.c.b16 %v2437, %v2436
  %v2460 = vpack.c.b16 %v2439, %v2438
  %v2461 = vpack.c.b16 %v2441, %v2440
  %v2462 = vpack.c.b16 %v2443, %v2442
  %v2463 = vpack.c.b16 %v2445, %v2444
  %v2464 = vpack.c.b16 %v2447, %v2446
  %v2465 = vpack.c.b16 %v2449, %v2448
  %v2466 = vpack.c.b16 %v2451, %v2450
  %v2467 = vpack.c.b16 %v2453, %v2452
  %v2468 = vpack.c.b16 %v2455, %v2454
  %v2469 = vpack.c.b16 %v2456, %v2456
  %vm2482 = vcmask 588800
  %v2484 = vsel %vm2482, %v2374, 0
  %v2487 = vsel %vm2282, %v2469, 0
  %2489 = vmatprep.subr.bf16.mxu0 0
  %2490 = vmatpush1.bf16.msra.mxu0 %v2464
  %2491 = vmatprep.subr.bf16.mxu0 0
  %2492 = vmatpush1.bf16.msra.mxu0 %v2463
  %2493 = vmatprep.subr.bf16.mxu0 0
  %2494 = vmatpush1.bf16.msra.mxu0 %v2462
  %2495 = vmatprep.subr.bf16.mxu0 0
  %2496 = vmatpush1.bf16.msra.mxu0 %v2461
  %2497 = vmatprep.subr.bf16.mxu0 0
  %2498 = vmatpush1.bf16.msra.mxu0 %v2460
  %2499 = vmatprep.subr.bf16.mxu0 0
  %2500 = vmatpush1.bf16.msra.mxu0 %v2459
  %2501 = vmatprep.subr.bf16.mxu0 0
  %2502 = vmatpush1.bf16.msra.mxu0 %v2458
  %2503 = vmatprep.subr.bf16.mxu0 0
  %2504 = vmatpush1.bf16.msra.mxu0 %v2457
  %2505 = vmatprep.subr.bf16.mxu0 0
  %2506 = vmatpush2.bf16.msra.mxu0 0
  %2507 = vmatprep.subr.bf16.mxu0 0
  %2508 = vmatpush2.bf16.msra.mxu0 0
  %2509 = vmatprep.subr.bf16.mxu0 0
  %2510 = vmatpush2.bf16.msra.mxu0 0
  %2511 = vmatprep.subr.bf16.mxu0 0
  %2512 = vmatpush2.bf16.msra.mxu0 %v2487
  %2513 = vmatprep.subr.bf16.mxu0 0
  %2514 = vmatpush2.bf16.msra.mxu0 %v2468
  %2515 = vmatprep.subr.bf16.mxu0 0
  %2516 = vmatpush2.bf16.msra.mxu0 %v2467
  %2517 = vmatprep.subr.bf16.mxu0 0
  %2518 = vmatpush2.bf16.msra.mxu0 %v2466
  %2519 = vmatprep.subr.bf16.mxu0 0
  %2520 = vmatpush2.bf16.msra.mxu0 %v2465
  %2521 = vmatprep.mubr.bf16.mxu0 %v2484
  %2522 = vmatmul.mubr.bf16.gmra.mxu0 %v2373
  %v2523 = vpop.f32.mrf.mxu0
  %v2524 = vadd.f32 %v2405, %v2523
  %v2525 = vpop.f32.mrf.mxu0
  %v2526 = vpop.f32.mrf.mxu0
  %v2527 = vpop.f32.mrf.mxu0
  %2528 = vdwg.mxu0
  %vm2529 = vcmask 261120
  %v2530 = vsel %vm2529, %v2524, 0.0
  %2531 = vadd.xlane.f32.xlu0 %v2530
  %v2532 = vpop.xlane.xlu0 %2531
  %v2533 = vrcp.pop 32.0
  %v2534 = vmul.f32 %v2532, %v2533
  %v2535 = vsub.f32 %v2524, %v2534
  %v2536 = vmul.f32 %v2535, %v2535
  %v2537 = vsel %vm2529, %v2536, 0.0
  %2538 = vadd.xlane.f32.xlu0 %v2537
  %v2539 = vpop.xlane.xlu0 %2538
  %v2540 = vmul.f32 %v2539, %v2533
  %v2541 = vadd.f32 %v2540, 1e-05
  %v2542 = vrsqrt.pop %v2541
  %v2543 = vmul.f32 %v2535, %v2542
  %v2544 = vld [vmem:[%s8] sm:$0x1]
  %v2546 = vlaneseq
  %v2547 = vshrl.u32 %v2546, 7
  %v2548 = vsub.s32 0, %v2547
  %v2549 = vrot.slane %v2544, %v2548
  %v2551 = vmul.f32 %v2543, %v2549
  %v2552 = vld [vmem:[%s9] sm:$0x1]
  %v2554 = vlaneseq
  %v2555 = vshrl.u32 %v2554, 7
  %v2556 = vsub.s32 0, %v2555
  %v2557 = vrot.slane %v2552, %v2556
  %v2559 = vadd.f32 %v2551, %v2557
  %v2560 = vtanh.pop %v2559
  %v2561 = vpack.c.bf16 %v2560, %v2560
  %v2562 = vld [vmem:[%s10] sm:$0xf]
  %v2563 = vld [vmem:[%s10 + $0x4] sm:$0xf]
  %v2564 = vld [vmem:[%s10 + $0x8] sm:$0xf]
  %v2565 = vld [vmem:[%s10 + $0xc] sm:$0xf]
  %v2566 = vld [vmem:[%s11] sm:$0x1]
  %v2568 = vlaneseq
  %v2569 = vshrl.u32 %v2568, 7
  %v2570 = vsub.s32 0, %v2569
  %v2571 = vrot.slane %v2566, %v2570
  %v2577 = vunpack.c.l.b16 %v2562
  %v2578 = vunpack.c.l.b16 %v2563
  %v2579 = vunpack.c.l.b16 %v2564
  %v2580 = vunpack.c.l.b16 %v2565
  %v2581 = vpack.c.b16 %v2578, %v2577
  %v2582 = vpack.c.b16 %v2580, %v2579
  %v2586 = vsel %vm2529, %v2561, 0
  %2588 = vmatprep.subr.bf16.mxu0 0
  %2589 = vmatpush1.bf16.msra.mxu0 0
  %2590 = vmatprep.subr.bf16.mxu0 0
  %2591 = vmatpush1.bf16.msra.mxu0 0
  %2592 = vmatprep.subr.bf16.mxu0 0
  %2593 = vmatpush1.bf16.msra.mxu0 0
  %2594 = vmatprep.subr.bf16.mxu0 0
  %2595 = vmatpush1.bf16.msra.mxu0 0
  %2596 = vmatprep.subr.bf16.mxu0 0
  %2597 = vmatpush1.bf16.msra.mxu0 0
  %2598 = vmatprep.subr.bf16.mxu0 0
  %2599 = vmatpush1.bf16.msra.mxu0 0
  %2600 = vmatprep.subr.bf16.mxu0 0
  %2601 = vmatpush1.bf16.msra.mxu0 %v2582
  %2602 = vmatprep.subr.bf16.mxu0 0
  %2603 = vmatpush1.bf16.msra.mxu0 %v2581
  %2604 = vmatprep.subr.bf16.mxu0 0
  %2605 = vmatpush2.bf16.msra.mxu0 0
  %2606 = vmatprep.subr.bf16.mxu0 0
  %2607 = vmatpush2.bf16.msra.mxu0 0
  %2608 = vmatprep.subr.bf16.mxu0 0
  %2609 = vmatpush2.bf16.msra.mxu0 0
  %2610 = vmatprep.subr.bf16.mxu0 0
  %2611 = vmatpush2.bf16.msra.mxu0 0
  %2612 = vmatprep.subr.bf16.mxu0 0
  %2613 = vmatpush2.bf16.msra.mxu0 0
  %2614 = vmatprep.subr.bf16.mxu0 0
  %2615 = vmatpush2.bf16.msra.mxu0 0
  %2616 = vmatprep.subr.bf16.mxu0 0
  %2617 = vmatpush2.bf16.msra.mxu0 0
  %2618 = vmatprep.subr.bf16.mxu0 0
  %2619 = vmatpush2.bf16.msra.mxu0 0
  %2620 = vmatprep.mubr.bf16.mxu0 0
  %2621 = vmatmul.mubr.bf16.gmra.mxu0 %v2586
  %v2622 = vpop.f32.mrf.mxu0
  %v2623 = vadd.f32 %v2571, %v2622
  %v2624 = vpop.f32.mrf.mxu0
  %v2625 = vpop.f32.mrf.mxu0
  %v2626 = vpop.f32.mrf.mxu0
  %2627 = vdwg.mxu0
  %v2628 = vmax.f32 %v2623, 0.0
  %v2629 = vpack.c.bf16 %v2628, %v2628
  %v2630 = vld [vmem:[%s12] sm:$0xf]
  %v2631 = vld [vmem:[%s12 + $0x4] sm:$0xf]
  %v2632 = vld [vmem:[%s12 + $0x8] sm:$0xf]
  %v2633 = vld [vmem:[%s12 + $0xc] sm:$0xf]
  %v2634 = vld [vmem:[%s13] sm:$0x1]
  %v2636 = vlaneseq
  %v2637 = vshrl.u32 %v2636, 7
  %v2638 = vsub.s32 0, %v2637
  %v2639 = vrot.slane %v2634, %v2638
  %v2645 = vunpack.c.l.b16 %v2630
  %v2646 = vunpack.c.l.b16 %v2631
  %v2647 = vunpack.c.l.b16 %v2632
  %v2648 = vunpack.c.l.b16 %v2633
  %v2649 = vpack.c.b16 %v2646, %v2645
  %v2650 = vpack.c.b16 %v2648, %v2647
  %v2654 = vsel %vm2529, %v2629, 0
  %2656 = vmatprep.subr.bf16.mxu0 0
  %2657 = vmatpush1.bf16.msra.mxu0 0
  %2658 = vmatprep.subr.bf16.mxu0 0
  %2659 = vmatpush1.bf16.msra.mxu0 0
  %2660 = vmatprep.subr.bf16.mxu0 0
  %2661 = vmatpush1.bf16.msra.mxu0 0
  %2662 = vmatprep.subr.bf16.mxu0 0
  %2663 = vmatpush1.bf16.msra.mxu0 0
  %2664 = vmatprep.subr.bf16.mxu0 0
  %2665 = vmatpush1.bf16.msra.mxu0 0
  %2666 = vmatprep.subr.bf16.mxu0 0
  %2667 = vmatpush1.bf16.msra.mxu0 0
  %2668 = vmatprep.subr.bf16.mxu0 0
  %2669 = vmatpush1.bf16.msra.mxu0 %v2650
  %2670 = vmatprep.subr.bf16.mxu0 0
  %2671 = vmatpush1.bf16.msra.mxu0 %v2649
  %2672 = vmatprep.subr.bf16.mxu0 0
  %2673 = vmatpush2.bf16.msra.mxu0 0
  %2674 = vmatprep.subr.bf16.mxu0 0
  %2675 = vmatpush2.bf16.msra.mxu0 0
  %2676 = vmatprep.subr.bf16.mxu0 0
  %2677 = vmatpush2.bf16.msra.mxu0 0
  %2678 = vmatprep.subr.bf16.mxu0 0
  %2679 = vmatpush2.bf16.msra.mxu0 0
  %2680 = vmatprep.subr.bf16.mxu0 0
  %2681 = vmatpush2.bf16.msra.mxu0 0
  %2682 = vmatprep.subr.bf16.mxu0 0
  %2683 = vmatpush2.bf16.msra.mxu0 0
  %2684 = vmatprep.subr.bf16.mxu0 0
  %2685 = vmatpush2.bf16.msra.mxu0 0
  %2686 = vmatprep.subr.bf16.mxu0 0
  %2687 = vmatpush2.bf16.msra.mxu0 0
  %2688 = vmatprep.mubr.bf16.mxu0 0
  %2689 = vmatmul.mubr.bf16.gmra.mxu0 %v2654
  %v2690 = vpop.f32.mrf.mxu0
  %v2691 = vadd.f32 %v2639, %v2690
  %v2692 = vpop.f32.mrf.mxu0
  %v2693 = vpop.f32.mrf.mxu0
  %v2694 = vpop.f32.mrf.mxu0
  %2695 = vdwg.mxu0
  %v2696 = vmax.f32 %v2691, 0.0
  %v2697 = vpack.c.bf16 %v2696, %v2696
  %v2698 = vld [vmem:[%s14] sm:$0xf]
  %v2699 = vld [vmem:[%s14 + $0x4] sm:$0xf]
  %v2700 = vld [vmem:[%s14 + $0x8] sm:$0xf]
  %v2701 = vld [vmem:[%s14 + $0xc] sm:$0xf]
  %v2702 = vld [vmem:[%s15] sm:$0x1]
  %v2704 = vlaneseq
  %v2705 = vshrl.u32 %v2704, 7
  %v2706 = vsub.s32 0, %v2705
  %v2707 = vrot.slane %v2702, %v2706
  %v2713 = vunpack.c.l.b16 %v2698
  %v2714 = vunpack.c.l.b16 %v2699
  %v2715 = vunpack.c.l.b16 %v2700
  %v2716 = vunpack.c.l.b16 %v2701
  %v2717 = vpack.c.b16 %v2714, %v2713
  %v2718 = vpack.c.b16 %v2716, %v2715
  %v2722 = vsel %vm2529, %v2697, 0
  %2724 = vmatprep.subr.bf16.mxu0 0
  %2725 = vmatpush1.bf16.msra.mxu0 0
  %2726 = vmatprep.subr.bf16.mxu0 0
  %2727 = vmatpush1.bf16.msra.mxu0 0
  %2728 = vmatprep.subr.bf16.mxu0 0
  %2729 = vmatpush1.bf16.msra.mxu0 0
  %2730 = vmatprep.subr.bf16.mxu0 0
  %2731 = vmatpush1.bf16.msra.mxu0 0
  %2732 = vmatprep.subr.bf16.mxu0 0
  %2733 = vmatpush1.bf16.msra.mxu0 0
  %2734 = vmatprep.subr.bf16.mxu0 0
  %2735 = vmatpush1.bf16.msra.mxu0 0
  %2736 = vmatprep.subr.bf16.mxu0 0
  %2737 = vmatpush1.bf16.msra.mxu0 %v2718
  %2738 = vmatprep.subr.bf16.mxu0 0
  %2739 = vmatpush1.bf16.msra.mxu0 %v2717
  %2740 = vmatprep.subr.bf16.mxu0 0
  %2741 = vmatpush2.bf16.msra.mxu0 0
  %2742 = vmatprep.subr.bf16.mxu0 0
  %2743 = vmatpush2.bf16.msra.mxu0 0
  %2744 = vmatprep.subr.bf16.mxu0 0
  %2745 = vmatpush2.bf16.msra.mxu0 0
  %2746 = vmatprep.subr.bf16.mxu0 0
  %2747 = vmatpush2.bf16.msra.mxu0 0
  %2748 = vmatprep.subr.bf16.mxu0 0
  %2749 = vmatpush2.bf16.msra.mxu0 0
  %2750 = vmatprep.subr.bf16.mxu0 0
  %2751 = vmatpush2.bf16.msra.mxu0 0
  %2752 = vmatprep.subr.bf16.mxu0 0
  %2753 = vmatpush2.bf16.msra.mxu0 0
  %2754 = vmatprep.subr.bf16.mxu0 0
  %2755 = vmatpush2.bf16.msra.mxu0 0
  %2756 = vmatprep.mubr.bf16.mxu0 0
  %2757 = vmatmul.mubr.bf16.gmra.mxu0 %v2722
  %v2758 = vpop.f32.mrf.mxu0
  %v2759 = vadd.f32 %v2707, %v2758
  %v2760 = vpop.f32.mrf.mxu0
  %v2761 = vpop.f32.mrf.mxu0
  %v2762 = vpop.f32.mrf.mxu0
  %2763 = vdwg.mxu0
  %v2764 = vtanh.pop %v2759
  %v2765 = vadd.f32 %v2764, 1.0
  %v2766 = vmul.f32 %v2765, 6.0
  %v2767 = vadd.f32 %v2766, -10.0
  %v2768 = vld [vmem:[%s1] sm:$0xff]
  %v2769 = vmul.f32 %v2767, 1.442695
  %v2770 = vpow.pop %v2769
  %2772 = vrot.lane.b32.xlu0 %v2770, 124
  %v2773 = vpop.permute.xlu0 %2772
  %v2775 = vmul.f32 %v2768, %v2773
  %v2776 = vadd.f32 %v2759, %v2775
  %v2777 = vmul.f32 %v2768, %v2768
  %v2778 = vmul.f32 %v2777, -0.5
  %2780 = vrot.lane.b32.xlu0 %v2767, 124
  %v2781 = vpop.permute.xlu0 %2780
  %v2783 = vsub.f32 %v2778, %v2781
  %vm2784 = vcmask 31744
  %v2785 = vsel %vm2784, %v2783, 0.0
  %2786 = vadd.xlane.f32.xlu0 %v2785
  %v2787 = vpop.xlane.xlu0 %2786
  %v2788 = vsub.f32 %v2787, 3.675754
  %v2789 = vtanh.pop %v2776
  %v2790 = vmul.f32 %v2789, %v2789
  %v2791 = vsub.f32 1.0, %v2790
  %v2792 = vmax.f32 %v2791, 0.0
  %v2793 = vadd.f32 %v2792, 1e-06
  %v2794 = vlog2.pop %v2793
  %v2795 = vmul.f32 %v2794, 0.6931472
  %v2796 = vsel %vm2784, %v2795, 0.0
  %2797 = vadd.xlane.f32.xlu0 %v2796
  %v2798 = vpop.xlane.xlu0 %2797
  %v2799 = vsub.f32 %v2788, %v2798
  %2800 = vst [vmem:[%s16] sm:$0xff] 0.0
  %2801 = vst.msk [vmem:[%s16] sm:$0xff] %vm2784, %v2764
  %2803 = vrot.lane.b32.xlu0 %v2789, 4
  %v2804 = vpop.permute.xlu0 %2803
  %vm2806 = vcmask 64544
  %2807 = vst.msk [vmem:[%s16] sm:$0xff] %vm2806, %v2804
  %2808 = vrot.lane.b32.xlu0 %v2767, 4
  %v2809 = vpop.permute.xlu0 %2808
  %vm2811 = vcmask 97344
  %2812 = vst.msk [vmem:[%s16] sm:$0xff] %vm2811, %v2809
  %vm2813 = vcmask 105568
  %2814 = vst.msk [vmem:[%s16] sm:$0xff] %vm2813, %v2799
  // Predicated region
  $region66: #{_actor_forward_impl.1} parent=0 // pred_check
    _
  $region67: #{_actor_forward_impl.1} parent=0 // pred_check_branch
    %2816 = sbr.rel (0) target = $region69
  $region68: #{_actor_forward_impl.1} parent=0 // pred_region
    _
  $region69: #{_actor_forward_impl.1} parent=0 // pred_fallthru
    _
  // Predicated region
  $region70: #{_actor_forward_impl.1} parent=0 // pred_check
    _
  $region71: #{_actor_forward_impl.1} parent=0 // pred_check_branch
    %2818 = sbr.rel (0) target = $region73
  $region72: #{_actor_forward_impl.1} parent=0 // pred_region
    _
  $region73: #{_actor_forward_impl.1} parent=0 // pred_fallthru
    _

</llo_original>
